<compile_context>
chip_gen: v6e
topology: v6e:2x2x1
jax: 0.10.0
libtpu: 0.0.40
codegen_flags: <defaults>
</compile_context>

<pallas_src>
import jax
import jax.numpy as jnp
from jax.experimental import pallas as pl
from jax.experimental.pallas import tpu as pltpu


def _round_up(x, m):
    return ((x + m - 1) // m) * m


def _pick_tile(dim, target):
    """Largest tile <= target that divides dim (falls back to the full dim)."""
    if dim <= target:
        return dim
    t = target
    while t > 8 and dim % t:
        t //= 2
    return t if dim % t == 0 else dim


# --------------------------------------------------------------------------- #
# Kernel 1: batched input projection + serial LSTM recurrence.
# --------------------------------------------------------------------------- #
def _lstm_recurrence_kernel(x_ref, wih_ref, whh_ref, b_ref,
                            hs_ref, hn_ref, cn_ref, gin_scr):
    B, H = hn_ref.shape
    TB = x_ref.shape[0]
    T = TB // B
    H4 = 4 * H

    # ---- 1) ONE lane-dense input projection for all timesteps (off the serial
    #         critical path).  bf16 operands, f32 accumulate; bias pre-added.
    gin_scr[...] = (jnp.dot(x_ref[...], wih_ref[...],
                            preferred_element_type=jnp.float32)
                    + b_ref[...])                                   # (T*B, 4H) f32

    whh = whh_ref[...]                                              # (H, 4H) f32, hoisted

    # ---- 2) Serial recurrence: ONE (B,H)@(H,4H) matmul + fused activations per step.
    def step(t, carry):
        h, c = carry
        off = t * B
        if B % 8 == 0:
            off = pl.multiple_of(off, 8)                            # aligned, unmasked vld/vst
        gates = gin_scr[pl.ds(off, B), :] + jnp.dot(
            h, whh, preferred_element_type=jnp.float32)             # (B, 4H)
        sig = jax.nn.sigmoid(gates)                                 # 1 sigmoid over 4H lanes
        tah = jnp.tanh(gates)                                       # 1 tanh    over 4H lanes
        i_g = sig[:, 0 * H:1 * H]
        f_g = sig[:, 1 * H:2 * H]
        g_g = tah[:, 2 * H:3 * H]
        o_g = sig[:, 3 * H:4 * H]
        c_new = f_g * c + i_g * g_g
        h_new = o_g * jnp.tanh(c_new)
        hs_ref[pl.ds(off, B), :] = h_new                            # collect h_t for decoder
        return (h_new, c_new)

    h0 = jnp.zeros((B, H), jnp.float32)
    c0 = jnp.zeros((B, H), jnp.float32)
    h_T, c_T = jax.lax.fori_loop(0, T, step, (h0, c0), unroll=min(T, 8))

    hn_ref[...] = h_T
    cn_ref[...] = c_T


def _lstm_recurrence_call(x_flat, wih, whh, bias, *, batch):
    TB, E = x_flat.shape
    H, H4 = whh.shape
    B = batch

    grid_spec = pltpu.PrefetchScalarGridSpec(
        num_scalar_prefetch=0,
        grid=(1,),                                   # recurrence lives entirely in-kernel
        in_specs=[
            pl.BlockSpec((TB, E), lambda i: (0, 0)),         # embeddings (flattened over time)
            pl.BlockSpec((E, H4), lambda i: (0, 0)),         # W_ih^T, gate-fused (lane-dense)
            pl.BlockSpec((H, H4), lambda i: (0, 0)),         # W_hh^T, gate-fused
            pl.BlockSpec((1, H4), lambda i: (0, 0)),         # b_ih + b_hh
        ],
        out_specs=[
            pl.BlockSpec((TB, H), lambda i: (0, 0)),         # h_t slab (consumed by decoder)
            pl.BlockSpec((B, H), lambda i: (0, 0)),          # h_n
            pl.BlockSpec((B, H), lambda i: (0, 0)),          # c_n
        ],
        scratch_shapes=[
            pltpu.VMEM((TB, H4), jnp.float32),               # fused per-gate input projections
        ],
    )

    # TODO(synk): on v7x, shard the (independent-per-row) batch recurrence over the
    # second TensorCore via a leading "parallel" grid axis over B chunks (B%8==0).
    return pl.pallas_call(
        _lstm_recurrence_kernel,
        out_shape=(
            jax.ShapeDtypeStruct((TB, H), jnp.float32),
            jax.ShapeDtypeStruct((B, H), jnp.float32),
            jax.ShapeDtypeStruct((B, H), jnp.float32),
        ),
        grid_spec=grid_spec,
        compiler_params=pltpu.CompilerParams(
            dimension_semantics=("arbitrary",)),
    )(x_flat, wih, whh, bias)


# --------------------------------------------------------------------------- #
# Kernel 2: decoder — standard pipelined tiled matmul (P1), lane-dense output.
# --------------------------------------------------------------------------- #
def _decoder_kernel(hs_ref, w_ref, b_ref, out_ref):
    out_ref[...] = (jnp.dot(hs_ref[...].astype(w_ref.dtype), w_ref[...],
                            preferred_element_type=jnp.float32)
                    + b_ref[...]).astype(out_ref.dtype)


def _decoder_call(hs, wdec, bdec, *, tm_target=256, tn_target=512):
    TB, H = hs.shape
    Vp = wdec.shape[1]
    tm = _pick_tile(TB, tm_target)
    tn = _pick_tile(Vp, tn_target)

    grid_spec = pltpu.PrefetchScalarGridSpec(
        num_scalar_prefetch=0,
        grid=(TB // tm, Vp // tn),
        in_specs=[
            pl.BlockSpec((tm, H), lambda i, j: (i, 0)),
            pl.BlockSpec((H, tn), lambda i, j: (0, j)),
            pl.BlockSpec((1, tn), lambda i, j: (0, j)),
        ],
        out_specs=pl.BlockSpec((tm, tn), lambda i, j: (i, j)),
    )

    return pl.pallas_call(
        _decoder_kernel,
        out_shape=jax.ShapeDtypeStruct((TB, Vp), jnp.float32),
        grid_spec=grid_spec,
        compiler_params=pltpu.CompilerParams(
            dimension_semantics=("parallel", "parallel")),
    )(hs, wdec, bdec)


# --------------------------------------------------------------------------- #
# Parameter prep (one-time) + forward wrapper.
# --------------------------------------------------------------------------- #
def prep_params(params, mxu_dtype=jnp.bfloat16):
    """One-time re-layout of raw PyTorch-style weights (hoisted out of the forward).

    mxu_dtype: dtype fed to the batched MXU matmuls (input projection & decoder).
    W_hh and all recurrence elementwise state stay f32.
    """
    emb, w_ih, w_hh, b_ih, b_hh, w_dec, b_dec = params
    H = w_hh.shape[1]
    V = w_dec.shape[0]
    Vp = _round_up(V, 128)

    emb_c = emb.astype(mxu_dtype)                                   # (V, E)
    wih_t = w_ih.T.astype(mxu_dtype)                                # (E, 4H)  gate-fused
    whh_t = w_hh.T.astype(jnp.float32)                              # (H, 4H)  gate-fused, f32
    bias = (b_ih + b_hh).reshape(1, 4 * H).astype(jnp.float32)      # (1, 4H)
    wdec_t = jnp.zeros((H, Vp), mxu_dtype).at[:, :V].set(
        w_dec.T.astype(mxu_dtype))                                  # (H, Vp) lane-padded
    bdec_p = jnp.zeros((1, Vp), jnp.float32).at[:, :V].set(b_dec)   # (1, Vp)
    return (emb_c, wih_t, whh_t, bias, wdec_t, bdec_p)


def net_forward(x_tokens, prepped, vocab_size):
    """Mirrors Net.forward: returns (logits.view(-1, V), (h_n, c_n))."""
    emb, wih, whh, bias, wdec, bdec = prepped
    T, B = x_tokens.shape

    # Embedding gather is glue (handled well by XLA).
    # TODO(synk): fuse the gather via scalar-prefetch row gather for very large T*B*E.
    x_flat = jnp.take(emb, x_tokens.reshape(-1), axis=0)            # (T*B, E), mxu dtype

    hs, h_n, c_n = _lstm_recurrence_call(x_flat, wih, whh, bias, batch=B)
    logits_p = _decoder_call(hs, wdec, bdec)                        # (T*B, Vp)

    logits = logits_p[:, :vocab_size]                               # drop lane padding
    hidden = (h_n[None, :, :], c_n[None, :, :])                     # (num_layers=1, B, H)
    return logits, hidden


# --------------------------------------------------------------------------- #
# Pure-JAX reference + init.
# --------------------------------------------------------------------------- #
def net_forward_ref(x_tokens, params):
    emb, w_ih, w_hh, b_ih, b_hh, w_dec, b_dec = params
    embed = jnp.take(emb, x_tokens, axis=0)                         # (T, B, E)
    T, B, _ = embed.shape
    H = w_hh.shape[1]

    def step(carry, x_t):
        h, c = carry
        gates = x_t @ w_ih.T + h @ w_hh.T + b_ih + b_hh
        i_g, f_g, g_g, o_g = jnp.split(gates, 4, axis=-1)
        i_g = jax.nn.sigmoid(i_g)
        f_g = jax.nn.sigmoid(f_g)
        g_g = jnp.tanh(g_g)
        o_g = jax.nn.sigmoid(o_g)
        c_new = f_g * c + i_g * g_g
        h_new = o_g * jnp.tanh(c_new)
        return (h_new, c_new), h_new

    (h_n, c_n), hs = jax.lax.scan(
        step, (jnp.zeros((B, H), jnp.float32), jnp.zeros((B, H), jnp.float32)), embed)
    logits = hs @ w_dec.T + b_dec
    return logits.reshape(T * B, -1), (h_n[None], c_n[None])


def init_params(key, vocab_size, embed_dim, hidden_dim):
    """Raw PyTorch-layout parameters (gate order i, f, g, o)."""
    ks = jax.random.split(key, 7)
    s = 1.0 / jnp.sqrt(hidden_dim)
    emb = jax.random.normal(ks[0], (vocab_size, embed_dim), jnp.float32)
    w_ih = jax.random.uniform(ks[1], (4 * hidden_dim, embed_dim), jnp.float32, -s, s)
    w_hh = jax.random.uniform(ks[2], (4 * hidden_dim, hidden_dim), jnp.float32, -s, s)
    b_ih = jax.random.uniform(ks[3], (4 * hidden_dim,), jnp.float32, -s, s)
    b_hh = jax.random.uniform(ks[4], (4 * hidden_dim,), jnp.float32, -s, s)
    w_dec = jax.random.uniform(ks[5], (vocab_size, hidden_dim), jnp.float32, -s, s)
    b_dec = jax.random.uniform(ks[6], (vocab_size,), jnp.float32, -s, s)
    return (emb, w_ih, w_hh, b_ih, b_hh, w_dec, b_dec)


if __name__ == "__main__":
    VOCAB, EMBED, HIDDEN = 64, 32, 32
    T, B = 8, 8                                     # x: (T=seq, B=batch) int tokens

    key = jax.random.PRNGKey(0)
    k_x, k_p = jax.random.split(key)
    x = jax.random.randint(k_x, (T, B), 0, VOCAB, dtype=jnp.int32)
    params = init_params(k_p, VOCAB, EMBED, HIDDEN)

    out_ref, (h_ref, c_ref) = net_forward_ref(x, params)
    fwd = jax.jit(net_forward, static_argnums=(2,))

    # --- f32 MXU path: strict correctness check against the f32 reference.
    prepped_f32 = prep_params(params, mxu_dtype=jnp.float32)        # one-time weight prep
    out, (h_n, c_n) = fwd(x, prepped_f32, VOCAB)
    out = jax.block_until_ready(out)
    h_n = jax.block_until_ready(h_n)
    c_n = jax.block_until_ready(c_n)
    assert out.shape == (T * B, VOCAB)
    assert h_n.shape == (1, B, HIDDEN) and c_n.shape == (1, B, HIDDEN)
    assert bool(jnp.allclose(out, out_ref, atol=1e-4, rtol=1e-4))
    assert bool(jnp.allclose(h_n, h_ref, atol=1e-4, rtol=1e-4))
    assert bool(jnp.allclose(c_n, c_ref, atol=1e-4, rtol=1e-4))

    # --- bf16 MXU path (recommended on v6e/v7x): same kernels, bf16 matmul operands,
    #     f32 accumulation & f32 recurrence state.  Loose tolerance vs f32 reference.
    prepped_bf16 = prep_params(params, mxu_dtype=jnp.bfloat16)
    out_b, (h_b, c_b) = fwd(x, prepped_bf16, VOCAB)
    out_b = jax.block_until_ready(out_b)
    assert bool(jnp.allclose(out_b, out_ref, atol=1e-1, rtol=1e-1))
    assert bool(jnp.allclose(h_b, h_ref, atol=1e-1, rtol=1e-1))

    print("KERNEL_OK")
</pallas_src>

<mosaic_0001>
module attributes {stable_mosaic.version = 11 : i64} {
  func.func @_decoder_kernel(%arg0: i32, %arg1: i32, %arg2: memref<64x32xf32, #tpu.memory_space<vmem>>, %arg3: memref<32x128xf32, #tpu.memory_space<vmem>>, %arg4: memref<1x128xf32, #tpu.memory_space<vmem>>, %arg5: memref<64x128xf32, #tpu.memory_space<vmem>>) attributes {dimension_semantics = [#tpu.dimension_semantics<parallel>, #tpu.dimension_semantics<parallel>], iteration_bounds = array<i64: 1, 1>, scalar_prefetch = 0 : i64, scratch_operands = 0 : i64, tpu.core_type = #tpu.core_type<tc>, window_params = [{transform_indices = @transform_0, window_bounds = array<i64: 64, 32>}, {transform_indices = @transform_1, window_bounds = array<i64: 32, 128>}, {transform_indices = @transform_2, window_bounds = array<i64: 1, 128>}, {transform_indices = @transform_3, window_bounds = array<i64: 64, 128>}]} {
    %c0 = arith.constant 0 : index
    %c0_0 = arith.constant 0 : index
    %0 = vector.load %arg2[%c0, %c0_0] : memref<64x32xf32, #tpu.memory_space<vmem>>, vector<64x32xf32>
    %c0_1 = arith.constant 0 : index
    %c0_2 = arith.constant 0 : index
    %1 = vector.load %arg3[%c0_1, %c0_2] : memref<32x128xf32, #tpu.memory_space<vmem>>, vector<32x128xf32>
    %cst = arith.constant dense<0.000000e+00> : vector<64x128xf32>
    %2 = tpu.matmul %0, %1, %cst {dimension_numbers = #tpu.dot_dimension_numbers<[1], [0], [0], [1], [0, 0, 1, 1], [], []>} : vector<64x32xf32>, vector<32x128xf32>, vector<64x128xf32> -> vector<64x128xf32>
    %c0_3 = arith.constant 0 : index
    %c0_4 = arith.constant 0 : index
    %3 = vector.load %arg4[%c0_3, %c0_4] : memref<1x128xf32, #tpu.memory_space<vmem>>, vector<1x128xf32>
    %4 = vector.broadcast %3 : vector<1x128xf32> to vector<64x128xf32>
    %5 = arith.addf %2, %4 : vector<64x128xf32>
    %c0_5 = arith.constant 0 : index
    %c0_6 = arith.constant 0 : index
    %6 = vector.load %arg5[%c0_5, %c0_6] : memref<64x128xf32, #tpu.memory_space<vmem>>, vector<64x128xf32>
    tpu.vector_store %arg5[%c0_5, %c0_6], %5 {strides = array<i32>} : memref<64x128xf32, #tpu.memory_space<vmem>>, vector<64x128xf32>,
    return
  }
  func.func @transform_0(%arg0: i32, %arg1: i32) -> (i32, i32) {
    %c0_i32 = arith.constant 0 : i32
    %c0_i32_0 = arith.constant 0 : i32
    return %arg0, %c0_i32 : i32, i32
  }
  func.func @transform_1(%arg0: i32, %arg1: i32) -> (i32, i32) {
    %c0_i32 = arith.constant 0 : i32
    %c0_i32_0 = arith.constant 0 : i32
    return %c0_i32, %arg1 : i32, i32
  }
  func.func @transform_2(%arg0: i32, %arg1: i32) -> (i32, i32) {
    %c0_i32 = arith.constant 0 : i32
    %c0_i32_0 = arith.constant 0 : i32
    return %c0_i32, %arg1 : i32, i32
  }
  func.func @transform_3(%arg0: i32, %arg1: i32) -> (i32, i32) {
    %c0_i32 = arith.constant 0 : i32
    return %arg0, %arg1 : i32, i32
  }
}

module attributes {stable_mosaic.version = 11 : i64} {
  func.func @_lstm_recurrence_kernel(%arg0: i32, %arg1: memref<64x32xf32, #tpu.memory_space<vmem>>, %arg2: memref<32x128xf32, #tpu.memory_space<vmem>>, %arg3: memref<32x128xf32, #tpu.memory_space<vmem>>, %arg4: memref<1x128xf32, #tpu.memory_space<vmem>>, %arg5: memref<64x32xf32, #tpu.memory_space<vmem>>, %arg6: memref<8x32xf32, #tpu.memory_space<vmem>>, %arg7: memref<8x32xf32, #tpu.memory_space<vmem>>, %arg8: memref<64x128xf32, #tpu.memory_space<vmem>>) attributes {dimension_semantics = [#tpu.dimension_semantics<arbitrary>], iteration_bounds = array<i64: 1>, scalar_prefetch = 0 : i64, scratch_operands = 1 : i64, tpu.core_type = #tpu.core_type<tc>, window_params = [{pipeline_mode = #tpu.pipeline_mode<synchronous>, transform_indices = @transform_0, window_bounds = array<i64: 64, 32>}, {pipeline_mode = #tpu.pipeline_mode<synchronous>, transform_indices = @transform_1, window_bounds = array<i64: 32, 128>}, {pipeline_mode = #tpu.pipeline_mode<synchronous>, transform_indices = @transform_2, window_bounds = array<i64: 32, 128>}, {pipeline_mode = #tpu.pipeline_mode<synchronous>, transform_indices = @transform_3, window_bounds = array<i64: 1, 128>}, {pipeline_mode = #tpu.pipeline_mode<synchronous>, transform_indices = @transform_4, window_bounds = array<i64: 64, 32>}, {pipeline_mode = #tpu.pipeline_mode<synchronous>, transform_indices = @transform_5, window_bounds = array<i64: 8, 32>}, {pipeline_mode = #tpu.pipeline_mode<synchronous>, transform_indices = @transform_6, window_bounds = array<i64: 8, 32>}]} {
    %c0 = arith.constant 0 : index
    %c0_0 = arith.constant 0 : index
    %0 = vector.load %arg1[%c0, %c0_0] : memref<64x32xf32, #tpu.memory_space<vmem>>, vector<64x32xf32>
    %c0_1 = arith.constant 0 : index
    %c0_2 = arith.constant 0 : index
    %1 = vector.load %arg2[%c0_1, %c0_2] : memref<32x128xf32, #tpu.memory_space<vmem>>, vector<32x128xf32>
    %cst = arith.constant dense<0.000000e+00> : vector<64x128xf32>
    %2 = tpu.matmul %0, %1, %cst {dimension_numbers = #tpu.dot_dimension_numbers<[1], [0], [0], [1], [0, 0, 1, 1], [], []>} : vector<64x32xf32>, vector<32x128xf32>, vector<64x128xf32> -> vector<64x128xf32>
    %c0_3 = arith.constant 0 : index
    %c0_4 = arith.constant 0 : index
    %3 = vector.load %arg4[%c0_3, %c0_4] : memref<1x128xf32, #tpu.memory_space<vmem>>, vector<1x128xf32>
    %4 = vector.broadcast %3 : vector<1x128xf32> to vector<64x128xf32>
    %5 = arith.addf %2, %4 : vector<64x128xf32>
    %c0_5 = arith.constant 0 : index
    %c0_6 = arith.constant 0 : index
    %6 = vector.load %arg8[%c0_5, %c0_6] : memref<64x128xf32, #tpu.memory_space<vmem>>, vector<64x128xf32>
    tpu.vector_store %arg8[%c0_5, %c0_6], %5 {strides = array<i32>} : memref<64x128xf32, #tpu.memory_space<vmem>>, vector<64x128xf32>,
    %c0_7 = arith.constant 0 : index
    %c0_8 = arith.constant 0 : index
    %7 = vector.load %arg3[%c0_7, %c0_8] : memref<32x128xf32, #tpu.memory_space<vmem>>, vector<32x128xf32>
    %cst_9 = arith.constant 0.000000e+00 : f32
    %8 = vector.broadcast %cst_9 : f32 to vector<8x32xf32>
    %cst_10 = arith.constant 0.000000e+00 : f32
    %9 = vector.broadcast %cst_10 : f32 to vector<8x32xf32>
    %c0_i32 = arith.constant 0 : i32
    %c8_i32 = arith.constant 8 : i32
    %10 = arith.muli %c0_i32, %c8_i32 : i32
    %11 = tpu.assume_multiple %10, 8 : i32
    %12 = arith.index_cast %11 : i32 to index
    %c0_11 = arith.constant 0 : index
    %13 = vector.load %arg8[%12, %c0_11] : memref<64x128xf32, #tpu.memory_space<vmem>>, vector<8x128xf32>
    %cst_12 = arith.constant dense<0.000000e+00> : vector<8x128xf32>
    %14 = tpu.matmul %8, %7, %cst_12 {dimension_numbers = #tpu.dot_dimension_numbers<[1], [0], [0], [1], [0, 0, 1, 1], [], []>} : vector<8x32xf32>, vector<32x128xf32>, vector<8x128xf32> -> vector<8x128xf32>
    %15 = arith.addf %13, %14 : vector<8x128xf32>
    %16 = arith.negf %15 : vector<8x128xf32>
    %17 = math.exp %16 : vector<8x128xf32>
    %cst_13 = arith.constant 1.000000e+00 : f32
    %18 = vector.broadcast %cst_13 : f32 to vector<8x128xf32>
    %19 = arith.addf %18, %17 : vector<8x128xf32>
    %20 = arith.divf %18, %19 : vector<8x128xf32>
    %21 = math.tanh %15 : vector<8x128xf32>
    %22 = vector.extract_strided_slice %20 {offsets = [0, 0], sizes = [8, 32], strides = [1, 1]} : vector<8x128xf32> to vector<8x32xf32>
    %23 = vector.extract_strided_slice %20 {offsets = [0, 32], sizes = [8, 32], strides = [1, 1]} : vector<8x128xf32> to vector<8x32xf32>
    %24 = vector.extract_strided_slice %21 {offsets = [0, 64], sizes = [8, 32], strides = [1, 1]} : vector<8x128xf32> to vector<8x32xf32>
    %25 = vector.extract_strided_slice %20 {offsets = [0, 96], sizes = [8, 32], strides = [1, 1]} : vector<8x128xf32> to vector<8x32xf32>
    %26 = arith.mulf %23, %9 : vector<8x32xf32>
    %27 = arith.mulf %22, %24 : vector<8x32xf32>
    %28 = arith.addf %26, %27 : vector<8x32xf32>
    %29 = math.tanh %28 : vector<8x32xf32>
    %30 = arith.mulf %25, %29 : vector<8x32xf32>
    %31 = arith.index_cast %11 : i32 to index
    %c0_14 = arith.constant 0 : index
    %32 = vector.load %arg5[%31, %c0_14] : memref<64x32xf32, #tpu.memory_space<vmem>>, vector<8x32xf32>
    tpu.vector_store %arg5[%31, %c0_14], %30 {strides = array<i32>} : memref<64x32xf32, #tpu.memory_space<vmem>>, vector<8x32xf32>,
    %c1_i32 = arith.constant 1 : i32
    %c8_i32_15 = arith.constant 8 : i32
    %33 = arith.muli %c1_i32, %c8_i32_15 : i32
    %34 = tpu.assume_multiple %33, 8 : i32
    %35 = arith.index_cast %34 : i32 to index
    %c0_16 = arith.constant 0 : index
    %36 = vector.load %arg8[%35, %c0_16] : memref<64x128xf32, #tpu.memory_space<vmem>>, vector<8x128xf32>
    %cst_17 = arith.constant dense<0.000000e+00> : vector<8x128xf32>
    %37 = tpu.matmul %30, %7, %cst_17 {dimension_numbers = #tpu.dot_dimension_numbers<[1], [0], [0], [1], [0, 0, 1, 1], [], []>} : vector<8x32xf32>, vector<32x128xf32>, vector<8x128xf32> -> vector<8x128xf32>
    %38 = arith.addf %36, %37 : vector<8x128xf32>
    %39 = arith.negf %38 : vector<8x128xf32>
    %40 = math.exp %39 : vector<8x128xf32>
    %cst_18 = arith.constant 1.000000e+00 : f32
    %41 = vector.broadcast %cst_18 : f32 to vector<8x128xf32>
    %42 = arith.addf %41, %40 : vector<8x128xf32>
    %43 = arith.divf %41, %42 : vector<8x128xf32>
    %44 = math.tanh %38 : vector<8x128xf32>
    %45 = vector.extract_strided_slice %43 {offsets = [0, 0], sizes = [8, 32], strides = [1, 1]} : vector<8x128xf32> to vector<8x32xf32>
    %46 = vector.extract_strided_slice %43 {offsets = [0, 32], sizes = [8, 32], strides = [1, 1]} : vector<8x128xf32> to vector<8x32xf32>
    %47 = vector.extract_strided_slice %44 {offsets = [0, 64], sizes = [8, 32], strides = [1, 1]} : vector<8x128xf32> to vector<8x32xf32>
    %48 = vector.extract_strided_slice %43 {offsets = [0, 96], sizes = [8, 32], strides = [1, 1]} : vector<8x128xf32> to vector<8x32xf32>
    %49 = arith.mulf %46, %28 : vector<8x32xf32>
    %50 = arith.mulf %45, %47 : vector<8x32xf32>
    %51 = arith.addf %49, %50 : vector<8x32xf32>
    %52 = math.tanh %51 : vector<8x32xf32>
    %53 = arith.mulf %48, %52 : vector<8x32xf32>
    %54 = arith.index_cast %34 : i32 to index
    %c0_19 = arith.constant 0 : index
    %55 = vector.load %arg5[%54, %c0_19] : memref<64x32xf32, #tpu.memory_space<vmem>>, vector<8x32xf32>
    tpu.vector_store %arg5[%54, %c0_19], %53 {strides = array<i32>} : memref<64x32xf32, #tpu.memory_space<vmem>>, vector<8x32xf32>,
    %c2_i32 = arith.constant 2 : i32
    %c8_i32_20 = arith.constant 8 : i32
    %56 = arith.muli %c2_i32, %c8_i32_20 : i32
    %57 = tpu.assume_multiple %56, 8 : i32
    %58 = arith.index_cast %57 : i32 to index
    %c0_21 = arith.constant 0 : index
    %59 = vector.load %arg8[%58, %c0_21] : memref<64x128xf32, #tpu.memory_space<vmem>>, vector<8x128xf32>
    %cst_22 = arith.constant dense<0.000000e+00> : vector<8x128xf32>
    %60 = tpu.matmul %53, %7, %cst_22 {dimension_numbers = #tpu.dot_dimension_numbers<[1], [0], [0], [1], [0, 0, 1, 1], [], []>} : vector<8x32xf32>, vector<32x128xf32>, vector<8x128xf32> -> vector<8x128xf32>
    %61 = arith.addf %59, %60 : vector<8x128xf32>
    %62 = arith.negf %61 : vector<8x128xf32>
    %63 = math.exp %62 : vector<8x128xf32>
    %cst_23 = arith.constant 1.000000e+00 : f32
    %64 = vector.broadcast %cst_23 : f32 to vector<8x128xf32>
    %65 = arith.addf %64, %63 : vector<8x128xf32>
    %66 = arith.divf %64, %65 : vector<8x128xf32>
    %67 = math.tanh %61 : vector<8x128xf32>
    %68 = vector.extract_strided_slice %66 {offsets = [0, 0], sizes = [8, 32], strides = [1, 1]} : vector<8x128xf32> to vector<8x32xf32>
    %69 = vector.extract_strided_slice %66 {offsets = [0, 32], sizes = [8, 32], strides = [1, 1]} : vector<8x128xf32> to vector<8x32xf32>
    %70 = vector.extract_strided_slice %67 {offsets = [0, 64], sizes = [8, 32], strides = [1, 1]} : vector<8x128xf32> to vector<8x32xf32>
    %71 = vector.extract_strided_slice %66 {offsets = [0, 96], sizes = [8, 32], strides = [1, 1]} : vector<8x128xf32> to vector<8x32xf32>
    %72 = arith.mulf %69, %51 : vector<8x32xf32>
    %73 = arith.mulf %68, %70 : vector<8x32xf32>
    %74 = arith.addf %72, %73 : vector<8x32xf32>
    %75 = math.tanh %74 : vector<8x32xf32>
    %76 = arith.mulf %71, %75 : vector<8x32xf32>
    %77 = arith.index_cast %57 : i32 to index
    %c0_24 = arith.constant 0 : index
    %78 = vector.load %arg5[%77, %c0_24] : memref<64x32xf32, #tpu.memory_space<vmem>>, vector<8x32xf32>
    tpu.vector_store %arg5[%77, %c0_24], %76 {strides = array<i32>} : memref<64x32xf32, #tpu.memory_space<vmem>>, vector<8x32xf32>,
    %c3_i32 = arith.constant 3 : i32
    %c8_i32_25 = arith.constant 8 : i32
    %79 = arith.muli %c3_i32, %c8_i32_25 : i32
    %80 = tpu.assume_multiple %79, 8 : i32
    %81 = arith.index_cast %80 : i32 to index
    %c0_26 = arith.constant 0 : index
    %82 = vector.load %arg8[%81, %c0_26] : memref<64x128xf32, #tpu.memory_space<vmem>>, vector<8x128xf32>
    %cst_27 = arith.constant dense<0.000000e+00> : vector<8x128xf32>
    %83 = tpu.matmul %76, %7, %cst_27 {dimension_numbers = #tpu.dot_dimension_numbers<[1], [0], [0], [1], [0, 0, 1, 1], [], []>} : vector<8x32xf32>, vector<32x128xf32>, vector<8x128xf32> -> vector<8x128xf32>
    %84 = arith.addf %82, %83 : vector<8x128xf32>
    %85 = arith.negf %84 : vector<8x128xf32>
    %86 = math.exp %85 : vector<8x128xf32>
    %cst_28 = arith.constant 1.000000e+00 : f32
    %87 = vector.broadcast %cst_28 : f32 to vector<8x128xf32>
    %88 = arith.addf %87, %86 : vector<8x128xf32>
    %89 = arith.divf %87, %88 : vector<8x128xf32>
    %90 = math.tanh %84 : vector<8x128xf32>
    %91 = vector.extract_strided_slice %89 {offsets = [0, 0], sizes = [8, 32], strides = [1, 1]} : vector<8x128xf32> to vector<8x32xf32>
    %92 = vector.extract_strided_slice %89 {offsets = [0, 32], sizes = [8, 32], strides = [1, 1]} : vector<8x128xf32> to vector<8x32xf32>
    %93 = vector.extract_strided_slice %90 {offsets = [0, 64], sizes = [8, 32], strides = [1, 1]} : vector<8x128xf32> to vector<8x32xf32>
    %94 = vector.extract_strided_slice %89 {offsets = [0, 96], sizes = [8, 32], strides = [1, 1]} : vector<8x128xf32> to vector<8x32xf32>
    %95 = arith.mulf %92, %74 : vector<8x32xf32>
    %96 = arith.mulf %91, %93 : vector<8x32xf32>
    %97 = arith.addf %95, %96 : vector<8x32xf32>
    %98 = math.tanh %97 : vector<8x32xf32>
    %99 = arith.mulf %94, %98 : vector<8x32xf32>
    %100 = arith.index_cast %80 : i32 to index
    %c0_29 = arith.constant 0 : index
    %101 = vector.load %arg5[%100, %c0_29] : memref<64x32xf32, #tpu.memory_space<vmem>>, vector<8x32xf32>
    tpu.vector_store %arg5[%100, %c0_29], %99 {strides = array<i32>} : memref<64x32xf32, #tpu.memory_space<vmem>>, vector<8x32xf32>,
    %c4_i32 = arith.constant 4 : i32
    %c8_i32_30 = arith.constant 8 : i32
    %102 = arith.muli %c4_i32, %c8_i32_30 : i32
    %103 = tpu.assume_multiple %102, 8 : i32
    %104 = arith.index_cast %103 : i32 to index
    %c0_31 = arith.constant 0 : index
    %105 = vector.load %arg8[%104, %c0_31] : memref<64x128xf32, #tpu.memory_space<vmem>>, vector<8x128xf32>
    %cst_32 = arith.constant dense<0.000000e+00> : vector<8x128xf32>
    %106 = tpu.matmul %99, %7, %cst_32 {dimension_numbers = #tpu.dot_dimension_numbers<[1], [0], [0], [1], [0, 0, 1, 1], [], []>} : vector<8x32xf32>, vector<32x128xf32>, vector<8x128xf32> -> vector<8x128xf32>
    %107 = arith.addf %105, %106 : vector<8x128xf32>
    %108 = arith.negf %107 : vector<8x128xf32>
    %109 = math.exp %108 : vector<8x128xf32>
    %cst_33 = arith.constant 1.000000e+00 : f32
    %110 = vector.broadcast %cst_33 : f32 to vector<8x128xf32>
    %111 = arith.addf %110, %109 : vector<8x128xf32>
    %112 = arith.divf %110, %111 : vector<8x128xf32>
    %113 = math.tanh %107 : vector<8x128xf32>
    %114 = vector.extract_strided_slice %112 {offsets = [0, 0], sizes = [8, 32], strides = [1, 1]} : vector<8x128xf32> to vector<8x32xf32>
    %115 = vector.extract_strided_slice %112 {offsets = [0, 32], sizes = [8, 32], strides = [1, 1]} : vector<8x128xf32> to vector<8x32xf32>
    %116 = vector.extract_strided_slice %113 {offsets = [0, 64], sizes = [8, 32], strides = [1, 1]} : vector<8x128xf32> to vector<8x32xf32>
    %117 = vector.extract_strided_slice %112 {offsets = [0, 96], sizes = [8, 32], strides = [1, 1]} : vector<8x128xf32> to vector<8x32xf32>
    %118 = arith.mulf %115, %97 : vector<8x32xf32>
    %119 = arith.mulf %114, %116 : vector<8x32xf32>
    %120 = arith.addf %118, %119 : vector<8x32xf32>
    %121 = math.tanh %120 : vector<8x32xf32>
    %122 = arith.mulf %117, %121 : vector<8x32xf32>
    %123 = arith.index_cast %103 : i32 to index
    %c0_34 = arith.constant 0 : index
    %124 = vector.load %arg5[%123, %c0_34] : memref<64x32xf32, #tpu.memory_space<vmem>>, vector<8x32xf32>
    tpu.vector_store %arg5[%123, %c0_34], %122 {strides = array<i32>} : memref<64x32xf32, #tpu.memory_space<vmem>>, vector<8x32xf32>,
    %c5_i32 = arith.constant 5 : i32
    %c8_i32_35 = arith.constant 8 : i32
    %125 = arith.muli %c5_i32, %c8_i32_35 : i32
    %126 = tpu.assume_multiple %125, 8 : i32
    %127 = arith.index_cast %126 : i32 to index
    %c0_36 = arith.constant 0 : index
    %128 = vector.load %arg8[%127, %c0_36] : memref<64x128xf32, #tpu.memory_space<vmem>>, vector<8x128xf32>
    %cst_37 = arith.constant dense<0.000000e+00> : vector<8x128xf32>
    %129 = tpu.matmul %122, %7, %cst_37 {dimension_numbers = #tpu.dot_dimension_numbers<[1], [0], [0], [1], [0, 0, 1, 1], [], []>} : vector<8x32xf32>, vector<32x128xf32>, vector<8x128xf32> -> vector<8x128xf32>
    %130 = arith.addf %128, %129 : vector<8x128xf32>
    %131 = arith.negf %130 : vector<8x128xf32>
    %132 = math.exp %131 : vector<8x128xf32>
    %cst_38 = arith.constant 1.000000e+00 : f32
    %133 = vector.broadcast %cst_38 : f32 to vector<8x128xf32>
    %134 = arith.addf %133, %132 : vector<8x128xf32>
    %135 = arith.divf %133, %134 : vector<8x128xf32>
    %136 = math.tanh %130 : vector<8x128xf32>
    %137 = vector.extract_strided_slice %135 {offsets = [0, 0], sizes = [8, 32], strides = [1, 1]} : vector<8x128xf32> to vector<8x32xf32>
    %138 = vector.extract_strided_slice %135 {offsets = [0, 32], sizes = [8, 32], strides = [1, 1]} : vector<8x128xf32> to vector<8x32xf32>
    %139 = vector.extract_strided_slice %136 {offsets = [0, 64], sizes = [8, 32], strides = [1, 1]} : vector<8x128xf32> to vector<8x32xf32>
    %140 = vector.extract_strided_slice %135 {offsets = [0, 96], sizes = [8, 32], strides = [1, 1]} : vector<8x128xf32> to vector<8x32xf32>
    %141 = arith.mulf %138, %120 : vector<8x32xf32>
    %142 = arith.mulf %137, %139 : vector<8x32xf32>
    %143 = arith.addf %141, %142 : vector<8x32xf32>
    %144 = math.tanh %143 : vector<8x32xf32>
    %145 = arith.mulf %140, %144 : vector<8x32xf32>
    %146 = arith.index_cast %126 : i32 to index
    %c0_39 = arith.constant 0 : index
    %147 = vector.load %arg5[%146, %c0_39] : memref<64x32xf32, #tpu.memory_space<vmem>>, vector<8x32xf32>
    tpu.vector_store %arg5[%146, %c0_39], %145 {strides = array<i32>} : memref<64x32xf32, #tpu.memory_space<vmem>>, vector<8x32xf32>,
    %c6_i32 = arith.constant 6 : i32
    %c8_i32_40 = arith.constant 8 : i32
    %148 = arith.muli %c6_i32, %c8_i32_40 : i32
    %149 = tpu.assume_multiple %148, 8 : i32
    %150 = arith.index_cast %149 : i32 to index
    %c0_41 = arith.constant 0 : index
    %151 = vector.load %arg8[%150, %c0_41] : memref<64x128xf32, #tpu.memory_space<vmem>>, vector<8x128xf32>
    %cst_42 = arith.constant dense<0.000000e+00> : vector<8x128xf32>
    %152 = tpu.matmul %145, %7, %cst_42 {dimension_numbers = #tpu.dot_dimension_numbers<[1], [0], [0], [1], [0, 0, 1, 1], [], []>} : vector<8x32xf32>, vector<32x128xf32>, vector<8x128xf32> -> vector<8x128xf32>
    %153 = arith.addf %151, %152 : vector<8x128xf32>
    %154 = arith.negf %153 : vector<8x128xf32>
    %155 = math.exp %154 : vector<8x128xf32>
    %cst_43 = arith.constant 1.000000e+00 : f32
    %156 = vector.broadcast %cst_43 : f32 to vector<8x128xf32>
    %157 = arith.addf %156, %155 : vector<8x128xf32>
    %158 = arith.divf %156, %157 : vector<8x128xf32>
    %159 = math.tanh %153 : vector<8x128xf32>
    %160 = vector.extract_strided_slice %158 {offsets = [0, 0], sizes = [8, 32], strides = [1, 1]} : vector<8x128xf32> to vector<8x32xf32>
    %161 = vector.extract_strided_slice %158 {offsets = [0, 32], sizes = [8, 32], strides = [1, 1]} : vector<8x128xf32> to vector<8x32xf32>
    %162 = vector.extract_strided_slice %159 {offsets = [0, 64], sizes = [8, 32], strides = [1, 1]} : vector<8x128xf32> to vector<8x32xf32>
    %163 = vector.extract_strided_slice %158 {offsets = [0, 96], sizes = [8, 32], strides = [1, 1]} : vector<8x128xf32> to vector<8x32xf32>
    %164 = arith.mulf %161, %143 : vector<8x32xf32>
    %165 = arith.mulf %160, %162 : vector<8x32xf32>
    %166 = arith.addf %164, %165 : vector<8x32xf32>
    %167 = math.tanh %166 : vector<8x32xf32>
    %168 = arith.mulf %163, %167 : vector<8x32xf32>
    %169 = arith.index_cast %149 : i32 to index
    %c0_44 = arith.constant 0 : index
    %170 = vector.load %arg5[%169, %c0_44] : memref<64x32xf32, #tpu.memory_space<vmem>>, vector<8x32xf32>
    tpu.vector_store %arg5[%169, %c0_44], %168 {strides = array<i32>} : memref<64x32xf32, #tpu.memory_space<vmem>>, vector<8x32xf32>,
    %c7_i32 = arith.constant 7 : i32
    %c8_i32_45 = arith.constant 8 : i32
    %171 = arith.muli %c7_i32, %c8_i32_45 : i32
    %172 = tpu.assume_multiple %171, 8 : i32
    %173 = arith.index_cast %172 : i32 to index
    %c0_46 = arith.constant 0 : index
    %174 = vector.load %arg8[%173, %c0_46] : memref<64x128xf32, #tpu.memory_space<vmem>>, vector<8x128xf32>
    %cst_47 = arith.constant dense<0.000000e+00> : vector<8x128xf32>
    %175 = tpu.matmul %168, %7, %cst_47 {dimension_numbers = #tpu.dot_dimension_numbers<[1], [0], [0], [1], [0, 0, 1, 1], [], []>} : vector<8x32xf32>, vector<32x128xf32>, vector<8x128xf32> -> vector<8x128xf32>
    %176 = arith.addf %174, %175 : vector<8x128xf32>
    %177 = arith.negf %176 : vector<8x128xf32>
    %178 = math.exp %177 : vector<8x128xf32>
    %cst_48 = arith.constant 1.000000e+00 : f32
    %179 = vector.broadcast %cst_48 : f32 to vector<8x128xf32>
    %180 = arith.addf %179, %178 : vector<8x128xf32>
    %181 = arith.divf %179, %180 : vector<8x128xf32>
    %182 = math.tanh %176 : vector<8x128xf32>
    %183 = vector.extract_strided_slice %181 {offsets = [0, 0], sizes = [8, 32], strides = [1, 1]} : vector<8x128xf32> to vector<8x32xf32>
    %184 = vector.extract_strided_slice %181 {offsets = [0, 32], sizes = [8, 32], strides = [1, 1]} : vector<8x128xf32> to vector<8x32xf32>
    %185 = vector.extract_strided_slice %182 {offsets = [0, 64], sizes = [8, 32], strides = [1, 1]} : vector<8x128xf32> to vector<8x32xf32>
    %186 = vector.extract_strided_slice %181 {offsets = [0, 96], sizes = [8, 32], strides = [1, 1]} : vector<8x128xf32> to vector<8x32xf32>
    %187 = arith.mulf %184, %166 : vector<8x32xf32>
    %188 = arith.mulf %183, %185 : vector<8x32xf32>
    %189 = arith.addf %187, %188 : vector<8x32xf32>
    %190 = math.tanh %189 : vector<8x32xf32>
    %191 = arith.mulf %186, %190 : vector<8x32xf32>
    %192 = arith.index_cast %172 : i32 to index
    %c0_49 = arith.constant 0 : index
    %193 = vector.load %arg5[%192, %c0_49] : memref<64x32xf32, #tpu.memory_space<vmem>>, vector<8x32xf32>
    tpu.vector_store %arg5[%192, %c0_49], %191 {strides = array<i32>} : memref<64x32xf32, #tpu.memory_space<vmem>>, vector<8x32xf32>,
    %c8_i32_50 = arith.constant 8 : i32
    %c0_51 = arith.constant 0 : index
    %c0_52 = arith.constant 0 : index
    %194 = vector.load %arg6[%c0_51, %c0_52] : memref<8x32xf32, #tpu.memory_space<vmem>>, vector<8x32xf32>
    tpu.vector_store %arg6[%c0_51, %c0_52], %191 {strides = array<i32>} : memref<8x32xf32, #tpu.memory_space<vmem>>, vector<8x32xf32>,
    %c0_53 = arith.constant 0 : index
    %c0_54 = arith.constant 0 : index
    %195 = vector.load %arg7[%c0_53, %c0_54] : memref<8x32xf32, #tpu.memory_space<vmem>>, vector<8x32xf32>
    tpu.vector_store %arg7[%c0_53, %c0_54], %189 {strides = array<i32>} : memref<8x32xf32, #tpu.memory_space<vmem>>, vector<8x32xf32>,
    return
  }
  func.func @transform_0(%arg0: i32) -> (i32, i32) {
    %c0_i32 = arith.constant 0 : i32
    %c0_i32_0 = arith.constant 0 : i32
    %c0_i32_1 = arith.constant 0 : i32
    return %c0_i32, %c0_i32_0 : i32, i32
  }
  func.func @transform_1(%arg0: i32) -> (i32, i32) {
    %c0_i32 = arith.constant 0 : i32
    %c0_i32_0 = arith.constant 0 : i32
    %c0_i32_1 = arith.constant 0 : i32
    return %c0_i32, %c0_i32_0 : i32, i32
  }
  func.func @transform_2(%arg0: i32) -> (i32, i32) {
    %c0_i32 = arith.constant 0 : i32
    %c0_i32_0 = arith.constant 0 : i32
    %c0_i32_1 = arith.constant 0 : i32
    return %c0_i32, %c0_i32_0 : i32, i32
  }
  func.func @transform_3(%arg0: i32) -> (i32, i32) {
    %c0_i32 = arith.constant 0 : i32
    %c0_i32_0 = arith.constant 0 : i32
    %c0_i32_1 = arith.constant 0 : i32
    return %c0_i32, %c0_i32_0 : i32, i32
  }
  func.func @transform_4(%arg0: i32) -> (i32, i32) {
    %c0_i32 = arith.constant 0 : i32
    %c0_i32_0 = arith.constant 0 : i32
    %c0_i32_1 = arith.constant 0 : i32
    return %c0_i32, %c0_i32_0 : i32, i32
  }
  func.func @transform_5(%arg0: i32) -> (i32, i32) {
    %c0_i32 = arith.constant 0 : i32
    %c0_i32_0 = arith.constant 0 : i32
    %c0_i32_1 = arith.constant 0 : i32
    return %c0_i32, %c0_i32_0 : i32, i32
  }
  func.func @transform_6(%arg0: i32) -> (i32, i32) {
    %c0_i32 = arith.constant 0 : i32
    %c0_i32_0 = arith.constant 0 : i32
    %c0_i32_1 = arith.constant 0 : i32
    return %c0_i32, %c0_i32_0 : i32, i32
  }
}

</mosaic_0001>

<llo_original>
// kernel: net_forward.3
$region0: #{net_forward.3}
  #allocation0 [shape = 'u32[]', space=smem, size = 0x4, offset = 0x4, fixed_abs, tag = 'smem constant byte address 0x4 - core index']
  #allocation1 [shape = 'u32[144,128]{1,0:T(1,128)}', space=vmem, size = 0x12000, scoped, tag = 'internal scratch']
  %s0 = inlined_call_operand.vmem [shape: f32[64,32], index: 0, kind: input, shape index: {}]
  %s1 = inlined_call_operand.vmem [shape: f32[32,128], index: 1, kind: input, shape index: {}]
  %s2 = inlined_call_operand.vmem [shape: f32[1,128], index: 2, kind: input, shape index: {}]
  %s3 = inlined_call_operand.hbm [shape: f32[64,128], index: 3, kind: output, shape index: {}]
  %s4 = sld [smem:[#allocation0]]
  $region22: #{net_forward.3} parent=0
    _
  %s6 = ssub.s32 1, %s4
  %s7 = scalar_select 0, %s6, %s4
  $region1: #{net_forward.3} parent=0
    #allocation2 [shape = 'u8[32768]{0}', space=vmem, size = 0x8000, scoped, tag = 'output window, operand 0, single buffered']
    #allocation3 [shape = 's32[1]{0}', space=sflag, size = 0x4, scoped, tag = 'scoped memory for net_forward.3']
    %8 = vsyncpa [#allocation3], 0
    // Predicated region
    $region2: #{net_forward.3} parent=1 // pred_check
      _
    $region3: #{net_forward.3} parent=1 // pred_check_branch
      %10 = sbr.rel (0) target = $region5
    $region4: #{net_forward.3} parent=1 // pred_region
      _
    $region5: #{net_forward.3} parent=1 // pred_fallthru
      _
    // Predicated region
    $region6: #{net_forward.3} parent=1 // pred_check
      _
    $region7: #{net_forward.3} parent=1 // pred_check_branch
      %12 = sbr.rel (0) target = $region9
    $region8: #{net_forward.3} parent=1 // pred_region
      _
    $region9: #{net_forward.3} parent=1 // pred_fallthru
      _
    // Predicated region
    $region10: #{net_forward.3} parent=1 // pred_check
      _
    $region11: #{net_forward.3} parent=1 // pred_check_branch
      %14 = sbr.rel (0) target = $region13
    $region12: #{net_forward.3} parent=1 // pred_region
      _
    $region13: #{net_forward.3} parent=1 // pred_fallthru
      _
    %v15 = vld [vmem:[%s0] sm:$0xff]
    %v16 = vld [vmem:[%s0 + $0x8] sm:$0xff]
    %v17 = vld [vmem:[%s0 + $0x10] sm:$0xff]
    %v18 = vld [vmem:[%s0 + $0x18] sm:$0xff]
    %v19 = vld [vmem:[%s0 + $0x20] sm:$0xff]
    %v20 = vld [vmem:[%s0 + $0x28] sm:$0xff]
    %v21 = vld [vmem:[%s0 + $0x30] sm:$0xff]
    %v22 = vld [vmem:[%s0 + $0x38] sm:$0xff]
    %v23 = vld [vmem:[%s1] sm:$0xff]
    %v24 = vld [vmem:[%s1 + $0x8] sm:$0xff]
    %v25 = vld [vmem:[%s1 + $0x10] sm:$0xff]
    %v26 = vld [vmem:[%s1 + $0x18] sm:$0xff]
    %v27 = vld [vmem:[%s2] sm:$0x1]
    %v29 = vlaneseq
    %v30 = vshrl.u32 %v29, 7
    %v31 = vsub.s32 0, %v30
    %v32 = vrot.slane %v27, %v31
    %vm34 = vcmask 261120
    %v36 = vsel %vm34, %v15, 0
    %v39 = vsel %vm34, %v16, 0
    %v42 = vsel %vm34, %v17, 0
    %v45 = vsel %vm34, %v18, 0
    %v48 = vsel %vm34, %v19, 0
    %v51 = vsel %vm34, %v20, 0
    %v54 = vsel %vm34, %v21, 0
    %v57 = vsel %vm34, %v22, 0
    %59 = vmatprep.subr.mxu0 0.0
    %60 = vmatpush1.msra.mxu0 0.0
    %61 = vmatprep.subr.mxu0 0.0
    %62 = vmatpush1.msra.mxu0 0.0
    %63 = vmatprep.subr.mxu0 0.0
    %64 = vmatpush1.msra.mxu0 0.0
    %65 = vmatprep.subr.mxu0 0.0
    %66 = vmatpush1.msra.mxu0 0.0
    %67 = vmatprep.subr.mxu0 0.0
    %68 = vmatpush1.msra.mxu0 0.0
    %69 = vmatprep.subr.mxu0 0.0
    %70 = vmatpush1.msra.mxu0 0.0
    %71 = vmatprep.subr.mxu0 0.0
    %72 = vmatpush1.msra.mxu0 0.0
    %73 = vmatprep.subr.mxu0 0.0
    %74 = vmatpush1.msra.mxu0 0.0
    %75 = vmatprep.subr.mxu0 0.0
    %76 = vmatpush1.msra.mxu0 0.0
    %77 = vmatprep.subr.mxu0 0.0
    %78 = vmatpush1.msra.mxu0 0.0
    %79 = vmatprep.subr.mxu0 0.0
    %80 = vmatpush1.msra.mxu0 0.0
    %81 = vmatprep.subr.mxu0 0.0
    %82 = vmatpush1.msra.mxu0 0.0
    %83 = vmatprep.subr.mxu0 0.0
    %84 = vmatpush1.msra.mxu0 %v26
    %85 = vmatprep.subr.mxu0 0.0
    %86 = vmatpush1.msra.mxu0 %v25
    %87 = vmatprep.subr.mxu0 0.0
    %88 = vmatpush1.msra.mxu0 %v24
    %89 = vmatprep.subr.mxu0 0.0
    %90 = vmatpush1.msra.mxu0 %v23
    %91 = vmatprep.subr.mxu0 0.0
    %92 = vmatpush2.msra.mxu0 0.0
    %93 = vmatprep.subr.mxu0 0.0
    %94 = vmatpush2.msra.mxu0 0.0
    %95 = vmatprep.subr.mxu0 0.0
    %96 = vmatpush2.msra.mxu0 0.0
    %97 = vmatprep.subr.mxu0 0.0
    %98 = vmatpush2.msra.mxu0 0.0
    %99 = vmatprep.subr.mxu0 0.0
    %100 = vmatpush2.msra.mxu0 0.0
    %101 = vmatprep.subr.mxu0 0.0
    %102 = vmatpush2.msra.mxu0 0.0
    %103 = vmatprep.subr.mxu0 0.0
    %104 = vmatpush2.msra.mxu0 0.0
    %105 = vmatprep.subr.mxu0 0.0
    %106 = vmatpush2.msra.mxu0 0.0
    %107 = vmatprep.subr.mxu0 0.0
    %108 = vmatpush2.msra.mxu0 0.0
    %109 = vmatprep.subr.mxu0 0.0
    %110 = vmatpush2.msra.mxu0 0.0
    %111 = vmatprep.subr.mxu0 0.0
    %112 = vmatpush2.msra.mxu0 0.0
    %113 = vmatprep.subr.mxu0 0.0
    %114 = vmatpush2.msra.mxu0 0.0
    %115 = vmatprep.subr.mxu0 0.0
    %116 = vmatpush2.msra.mxu0 0.0
    %117 = vmatprep.subr.mxu0 0.0
    %118 = vmatpush2.msra.mxu0 0.0
    %119 = vmatprep.subr.mxu0 0.0
    %120 = vmatpush2.msra.mxu0 0.0
    %121 = vmatprep.subr.mxu0 0.0
    %122 = vmatpush2.msra.mxu0 0.0
    %123 = vmatprep.mubr.f32.mxu0 0.0
    %124 = vmatmul.mubr.f32.gmra.mxu0 %v36
    %v125 = vpop.f32.mrf.mxu0
    %v126 = vadd.f32 %v32, %v125
    %v127 = vpop.f32.mrf.mxu0
    %128 = vmatprep.mubr.f32.mxu0 0.0
    %129 = vmatmul.mubr.f32.gmra.mxu0 %v39
    %v130 = vpop.f32.mrf.mxu0
    %v131 = vadd.f32 %v32, %v130
    %v132 = vpop.f32.mrf.mxu0
    %133 = vmatprep.mubr.f32.mxu0 0.0
    %134 = vmatmul.mubr.f32.gmra.mxu0 %v42
    %v135 = vpop.f32.mrf.mxu0
    %v136 = vadd.f32 %v32, %v135
    %v137 = vpop.f32.mrf.mxu0
    %138 = vmatprep.mubr.f32.mxu0 0.0
    %139 = vmatmul.mubr.f32.gmra.mxu0 %v45
    %v140 = vpop.f32.mrf.mxu0
    %v141 = vadd.f32 %v32, %v140
    %v142 = vpop.f32.mrf.mxu0
    %143 = vmatprep.mubr.f32.mxu0 0.0
    %144 = vmatmul.mubr.f32.gmra.mxu0 %v48
    %v145 = vpop.f32.mrf.mxu0
    %v146 = vadd.f32 %v32, %v145
    %v147 = vpop.f32.mrf.mxu0
    %148 = vmatprep.mubr.f32.mxu0 0.0
    %149 = vmatmul.mubr.f32.gmra.mxu0 %v51
    %v150 = vpop.f32.mrf.mxu0
    %v151 = vadd.f32 %v32, %v150
    %v152 = vpop.f32.mrf.mxu0
    %153 = vmatprep.mubr.f32.mxu0 0.0
    %154 = vmatmul.mubr.f32.gmra.mxu0 %v54
    %v155 = vpop.f32.mrf.mxu0
    %v156 = vadd.f32 %v32, %v155
    %v157 = vpop.f32.mrf.mxu0
    %158 = vmatprep.mubr.f32.mxu0 0.0
    %159 = vmatmul.mubr.f32.gmra.mxu0 %v57
    %v160 = vpop.f32.mrf.mxu0
    %v161 = vadd.f32 %v32, %v160
    %v162 = vpop.f32.mrf.mxu0
    %163 = vdwg.mxu0
    %164 = vst [vmem:[#allocation2] sm:$0xff] %v126
    %165 = vst [vmem:[#allocation2 + $0x8] sm:$0xff] %v131
    %166 = vst [vmem:[#allocation2 + $0x10] sm:$0xff] %v136
    %167 = vst [vmem:[#allocation2 + $0x18] sm:$0xff] %v141
    %168 = vst [vmem:[#allocation2 + $0x20] sm:$0xff] %v146
    %169 = vst [vmem:[#allocation2 + $0x28] sm:$0xff] %v151
    %170 = vst [vmem:[#allocation2 + $0x30] sm:$0xff] %v156
    %171 = vst [vmem:[#allocation2 + $0x38] sm:$0xff] %v161
    // Predicated region
    $region14: #{net_forward.3} parent=1 // pred_check
      _
    $region15: #{net_forward.3} parent=1 // pred_check_branch
      %173 = sbr.rel (0) target = $region17
    $region16: #{net_forward.3} parent=1 // pred_region
      %s175 = ssub.s32 1024, 1024
      %176 = vsyncadd [#allocation3], %s175
      %s177 = sshll.u32 [#allocation2], 4
      %s178 = int_to_ptr.vmem [resolvable:$true] %s177
      %183 = dma.vmem_to_hbm [thread:$0]  %s178, 1024, %s3, [#allocation3], 128, 128, 8
    $region17: #{net_forward.3} parent=1 // pred_fallthru
      _
    // Predicated region
    $region18: #{net_forward.3} parent=1 // pred_check
      _
    $region19: #{net_forward.3} parent=1 // pred_check_branch
      %185 = sbr.rel (0) target = $region21
    $region20: #{net_forward.3} parent=1 // pred_region
      %186 = dma.done [#allocation3], 1024
    $region21: #{net_forward.3} parent=1 // pred_fallthru
      _
    %187 = vsyncpa [#allocation3], 1

// kernel: net_forward.2
$region0: #{net_forward.2}
  #allocation0 [shape = 'u32[]', space=smem, size = 0x4, offset = 0x4, fixed_abs, tag = 'smem constant byte address 0x4 - core index']
  #allocation1 [shape = 'u32[144,128]{1,0:T(1,128)}', space=vmem, size = 0x12000, scoped, tag = 'internal scratch']
  #allocation2 [shape = 'f32[64,128]{1,0:T(8,128)}', space=vmem, size = 0x8000, scoped, tag = 'scratch operand']
  %s0 = inlined_call_operand.vmem [shape: f32[64,32], index: 0, kind: input, shape index: {}]
  %s1 = inlined_call_operand.vmem [shape: f32[32,128], index: 1, kind: input, shape index: {}]
  %s2 = inlined_call_operand.vmem [shape: f32[32,128], index: 2, kind: input, shape index: {}]
  %s3 = inlined_call_operand.vmem [shape: f32[1,128], index: 3, kind: input, shape index: {}]
  %s4 = inlined_call_operand.vmem [shape: f32[64,32], index: 4, kind: output, shape index: {0}]
  %s5 = inlined_call_operand.hbm [shape: f32[8,32], index: 5, kind: output, shape index: {1}]
  %s6 = inlined_call_operand.hbm [shape: f32[8,32], index: 6, kind: output, shape index: {2}]
  %7 = xla_tuple %s4, %s5, %s6
  %s8 = sld [smem:[#allocation0]]
  $region42: #{net_forward.2} parent=0
    _
  %s10 = ssub.s32 1, %s8
  %s11 = scalar_select 0, %s10, %s8
  $region1: #{net_forward.2} parent=0
    #allocation3 [shape = 'u8[4096]{0}', space=vmem, size = 0x1000, scoped, tag = 'output window, operand 1, single buffered']
    #allocation4 [shape = 's32[1]{0}', space=sflag, size = 0x4, scoped, tag = 'scoped memory for net_forward.2']
    #allocation5 [shape = 'u8[4096]{0}', space=vmem, size = 0x1000, scoped, tag = 'output window, operand 2, single buffered']
    #allocation6 [shape = 's32[1]{0}', space=sflag, size = 0x4, scoped, tag = 'scoped memory for net_forward.2']
    %12 = vsyncpa [#allocation4], 0
    %13 = vsyncpa [#allocation6], 0
    // Predicated region
    $region2: #{net_forward.2} parent=1 // pred_check
      _
    $region3: #{net_forward.2} parent=1 // pred_check_branch
      %15 = sbr.rel (0) target = $region5
    $region4: #{net_forward.2} parent=1 // pred_region
      _
    $region5: #{net_forward.2} parent=1 // pred_fallthru
      _
    // Predicated region
    $region6: #{net_forward.2} parent=1 // pred_check
      _
    $region7: #{net_forward.2} parent=1 // pred_check_branch
      %17 = sbr.rel (0) target = $region9
    $region8: #{net_forward.2} parent=1 // pred_region
      _
    $region9: #{net_forward.2} parent=1 // pred_fallthru
      _
    // Predicated region
    $region10: #{net_forward.2} parent=1 // pred_check
      _
    $region11: #{net_forward.2} parent=1 // pred_check_branch
      %19 = sbr.rel (0) target = $region13
    $region12: #{net_forward.2} parent=1 // pred_region
      _
    $region13: #{net_forward.2} parent=1 // pred_fallthru
      _
    // Predicated region
    $region14: #{net_forward.2} parent=1 // pred_check
      _
    $region15: #{net_forward.2} parent=1 // pred_check_branch
      %21 = sbr.rel (0) target = $region17
    $region16: #{net_forward.2} parent=1 // pred_region
      _
    $region17: #{net_forward.2} parent=1 // pred_fallthru
      _
    %v22 = vld [vmem:[%s0] sm:$0xff]
    %v23 = vld [vmem:[%s0 + $0x8] sm:$0xff]
    %v24 = vld [vmem:[%s0 + $0x10] sm:$0xff]
    %v25 = vld [vmem:[%s0 + $0x18] sm:$0xff]
    %v26 = vld [vmem:[%s0 + $0x20] sm:$0xff]
    %v27 = vld [vmem:[%s0 + $0x28] sm:$0xff]
    %v28 = vld [vmem:[%s0 + $0x30] sm:$0xff]
    %v29 = vld [vmem:[%s0 + $0x38] sm:$0xff]
    %v30 = vld [vmem:[%s1] sm:$0xff]
    %v31 = vld [vmem:[%s1 + $0x8] sm:$0xff]
    %v32 = vld [vmem:[%s1 + $0x10] sm:$0xff]
    %v33 = vld [vmem:[%s1 + $0x18] sm:$0xff]
    %v34 = vld [vmem:[%s3] sm:$0x1]
    %v36 = vlaneseq
    %v37 = vshrl.u32 %v36, 7
    %v38 = vsub.s32 0, %v37
    %v39 = vrot.slane %v34, %v38
    %vm41 = vcmask 261120
    %v43 = vsel %vm41, %v22, 0
    %v46 = vsel %vm41, %v23, 0
    %v49 = vsel %vm41, %v24, 0
    %v52 = vsel %vm41, %v25, 0
    %v55 = vsel %vm41, %v26, 0
    %v58 = vsel %vm41, %v27, 0
    %v61 = vsel %vm41, %v28, 0
    %v64 = vsel %vm41, %v29, 0
    %66 = vmatprep.subr.mxu0 0.0
    %67 = vmatpush1.msra.mxu0 0.0
    %68 = vmatprep.subr.mxu0 0.0
    %69 = vmatpush1.msra.mxu0 0.0
    %70 = vmatprep.subr.mxu0 0.0
    %71 = vmatpush1.msra.mxu0 0.0
    %72 = vmatprep.subr.mxu0 0.0
    %73 = vmatpush1.msra.mxu0 0.0
    %74 = vmatprep.subr.mxu0 0.0
    %75 = vmatpush1.msra.mxu0 0.0
    %76 = vmatprep.subr.mxu0 0.0
    %77 = vmatpush1.msra.mxu0 0.0
    %78 = vmatprep.subr.mxu0 0.0
    %79 = vmatpush1.msra.mxu0 0.0
    %80 = vmatprep.subr.mxu0 0.0
    %81 = vmatpush1.msra.mxu0 0.0
    %82 = vmatprep.subr.mxu0 0.0
    %83 = vmatpush1.msra.mxu0 0.0
    %84 = vmatprep.subr.mxu0 0.0
    %85 = vmatpush1.msra.mxu0 0.0
    %86 = vmatprep.subr.mxu0 0.0
    %87 = vmatpush1.msra.mxu0 0.0
    %88 = vmatprep.subr.mxu0 0.0
    %89 = vmatpush1.msra.mxu0 0.0
    %90 = vmatprep.subr.mxu0 0.0
    %91 = vmatpush1.msra.mxu0 %v33
    %92 = vmatprep.subr.mxu0 0.0
    %93 = vmatpush1.msra.mxu0 %v32
    %94 = vmatprep.subr.mxu0 0.0
    %95 = vmatpush1.msra.mxu0 %v31
    %96 = vmatprep.subr.mxu0 0.0
    %97 = vmatpush1.msra.mxu0 %v30
    %98 = vmatprep.subr.mxu0 0.0
    %99 = vmatpush2.msra.mxu0 0.0
    %100 = vmatprep.subr.mxu0 0.0
    %101 = vmatpush2.msra.mxu0 0.0
    %102 = vmatprep.subr.mxu0 0.0
    %103 = vmatpush2.msra.mxu0 0.0
    %104 = vmatprep.subr.mxu0 0.0
    %105 = vmatpush2.msra.mxu0 0.0
    %106 = vmatprep.subr.mxu0 0.0
    %107 = vmatpush2.msra.mxu0 0.0
    %108 = vmatprep.subr.mxu0 0.0
    %109 = vmatpush2.msra.mxu0 0.0
    %110 = vmatprep.subr.mxu0 0.0
    %111 = vmatpush2.msra.mxu0 0.0
    %112 = vmatprep.subr.mxu0 0.0
    %113 = vmatpush2.msra.mxu0 0.0
    %114 = vmatprep.subr.mxu0 0.0
    %115 = vmatpush2.msra.mxu0 0.0
    %116 = vmatprep.subr.mxu0 0.0
    %117 = vmatpush2.msra.mxu0 0.0
    %118 = vmatprep.subr.mxu0 0.0
    %119 = vmatpush2.msra.mxu0 0.0
    %120 = vmatprep.subr.mxu0 0.0
    %121 = vmatpush2.msra.mxu0 0.0
    %122 = vmatprep.subr.mxu0 0.0
    %123 = vmatpush2.msra.mxu0 0.0
    %124 = vmatprep.subr.mxu0 0.0
    %125 = vmatpush2.msra.mxu0 0.0
    %126 = vmatprep.subr.mxu0 0.0
    %127 = vmatpush2.msra.mxu0 0.0
    %128 = vmatprep.subr.mxu0 0.0
    %129 = vmatpush2.msra.mxu0 0.0
    %130 = vmatprep.mubr.f32.mxu0 0.0
    %131 = vmatmul.mubr.f32.gmra.mxu0 %v43
    %v132 = vpop.f32.mrf.mxu0
    %v133 = vadd.f32 %v39, %v132
    %v134 = vpop.f32.mrf.mxu0
    %135 = vmatprep.mubr.f32.mxu0 0.0
    %136 = vmatmul.mubr.f32.gmra.mxu0 %v46
    %v137 = vpop.f32.mrf.mxu0
    %v138 = vadd.f32 %v39, %v137
    %v139 = vpop.f32.mrf.mxu0
    %140 = vmatprep.mubr.f32.mxu0 0.0
    %141 = vmatmul.mubr.f32.gmra.mxu0 %v49
    %v142 = vpop.f32.mrf.mxu0
    %v143 = vadd.f32 %v39, %v142
    %v144 = vpop.f32.mrf.mxu0
    %145 = vmatprep.mubr.f32.mxu0 0.0
    %146 = vmatmul.mubr.f32.gmra.mxu0 %v52
    %v147 = vpop.f32.mrf.mxu0
    %v148 = vadd.f32 %v39, %v147
    %v149 = vpop.f32.mrf.mxu0
    %150 = vmatprep.mubr.f32.mxu0 0.0
    %151 = vmatmul.mubr.f32.gmra.mxu0 %v55
    %v152 = vpop.f32.mrf.mxu0
    %v153 = vadd.f32 %v39, %v152
    %v154 = vpop.f32.mrf.mxu0
    %155 = vmatprep.mubr.f32.mxu0 0.0
    %156 = vmatmul.mubr.f32.gmra.mxu0 %v58
    %v157 = vpop.f32.mrf.mxu0
    %v158 = vadd.f32 %v39, %v157
    %v159 = vpop.f32.mrf.mxu0
    %160 = vmatprep.mubr.f32.mxu0 0.0
    %161 = vmatmul.mubr.f32.gmra.mxu0 %v61
    %v162 = vpop.f32.mrf.mxu0
    %v163 = vadd.f32 %v39, %v162
    %v164 = vpop.f32.mrf.mxu0
    %165 = vmatprep.mubr.f32.mxu0 0.0
    %166 = vmatmul.mubr.f32.gmra.mxu0 %v64
    %v167 = vpop.f32.mrf.mxu0
    %v168 = vadd.f32 %v39, %v167
    %v169 = vpop.f32.mrf.mxu0
    %170 = vdwg.mxu0
    %171 = vst [vmem:[#allocation2] sm:$0xff] %v133
    %172 = vst [vmem:[#allocation2 + $0x8] sm:$0xff] %v138
    %173 = vst [vmem:[#allocation2 + $0x10] sm:$0xff] %v143
    %174 = vst [vmem:[#allocation2 + $0x18] sm:$0xff] %v148
    %175 = vst [vmem:[#allocation2 + $0x20] sm:$0xff] %v153
    %176 = vst [vmem:[#allocation2 + $0x28] sm:$0xff] %v158
    %177 = vst [vmem:[#allocation2 + $0x30] sm:$0xff] %v163
    %178 = vst [vmem:[#allocation2 + $0x38] sm:$0xff] %v168
    %v179 = vld [vmem:[%s2] sm:$0xff]
    %v180 = vld [vmem:[%s2 + $0x8] sm:$0xff]
    %v181 = vld [vmem:[%s2 + $0x10] sm:$0xff]
    %v182 = vld [vmem:[%s2 + $0x18] sm:$0xff]
    %v183 = vld [vmem:[#allocation2] sm:$0xff]
    %v185 = vsel %vm41, 0.0, 0
    %187 = vmatprep.subr.mxu0 0.0
    %188 = vmatpush1.msra.mxu0 0.0
    %189 = vmatprep.subr.mxu0 0.0
    %190 = vmatpush1.msra.mxu0 0.0
    %191 = vmatprep.subr.mxu0 0.0
    %192 = vmatpush1.msra.mxu0 0.0
    %193 = vmatprep.subr.mxu0 0.0
    %194 = vmatpush1.msra.mxu0 0.0
    %195 = vmatprep.subr.mxu0 0.0
    %196 = vmatpush1.msra.mxu0 0.0
    %197 = vmatprep.subr.mxu0 0.0
    %198 = vmatpush1.msra.mxu0 0.0
    %199 = vmatprep.subr.mxu0 0.0
    %200 = vmatpush1.msra.mxu0 0.0
    %201 = vmatprep.subr.mxu0 0.0
    %202 = vmatpush1.msra.mxu0 0.0
    %203 = vmatprep.subr.mxu0 0.0
    %204 = vmatpush1.msra.mxu0 0.0
    %205 = vmatprep.subr.mxu0 0.0
    %206 = vmatpush1.msra.mxu0 0.0
    %207 = vmatprep.subr.mxu0 0.0
    %208 = vmatpush1.msra.mxu0 0.0
    %209 = vmatprep.subr.mxu0 0.0
    %210 = vmatpush1.msra.mxu0 0.0
    %211 = vmatprep.subr.mxu0 0.0
    %212 = vmatpush1.msra.mxu0 %v182
    %213 = vmatprep.subr.mxu0 0.0
    %214 = vmatpush1.msra.mxu0 %v181
    %215 = vmatprep.subr.mxu0 0.0
    %216 = vmatpush1.msra.mxu0 %v180
    %217 = vmatprep.subr.mxu0 0.0
    %218 = vmatpush1.msra.mxu0 %v179
    %219 = vmatprep.subr.mxu0 0.0
    %220 = vmatpush2.msra.mxu0 0.0
    %221 = vmatprep.subr.mxu0 0.0
    %222 = vmatpush2.msra.mxu0 0.0
    %223 = vmatprep.subr.mxu0 0.0
    %224 = vmatpush2.msra.mxu0 0.0
    %225 = vmatprep.subr.mxu0 0.0
    %226 = vmatpush2.msra.mxu0 0.0
    %227 = vmatprep.subr.mxu0 0.0
    %228 = vmatpush2.msra.mxu0 0.0
    %229 = vmatprep.subr.mxu0 0.0
    %230 = vmatpush2.msra.mxu0 0.0
    %231 = vmatprep.subr.mxu0 0.0
    %232 = vmatpush2.msra.mxu0 0.0
    %233 = vmatprep.subr.mxu0 0.0
    %234 = vmatpush2.msra.mxu0 0.0
    %235 = vmatprep.subr.mxu0 0.0
    %236 = vmatpush2.msra.mxu0 0.0
    %237 = vmatprep.subr.mxu0 0.0
    %238 = vmatpush2.msra.mxu0 0.0
    %239 = vmatprep.subr.mxu0 0.0
    %240 = vmatpush2.msra.mxu0 0.0
    %241 = vmatprep.subr.mxu0 0.0
    %242 = vmatpush2.msra.mxu0 0.0
    %243 = vmatprep.subr.mxu0 0.0
    %244 = vmatpush2.msra.mxu0 0.0
    %245 = vmatprep.subr.mxu0 0.0
    %246 = vmatpush2.msra.mxu0 0.0
    %247 = vmatprep.subr.mxu0 0.0
    %248 = vmatpush2.msra.mxu0 0.0
    %249 = vmatprep.subr.mxu0 0.0
    %250 = vmatpush2.msra.mxu0 0.0
    %251 = vmatprep.mubr.f32.mxu0 0.0
    %252 = vmatmul.mubr.f32.gmra.mxu0 %v185
    %v253 = vpop.f32.mrf.mxu0
    %v254 = vadd.f32 0.0, %v253
    %v255 = vpop.f32.mrf.mxu0
    %256 = vdwg.mxu0
    %v257 = vadd.f32 %v183, %v254
    %v258 = vxor.u32 %v257, 2147483648
    %v259 = vmul.f32 %v258, 1.442695
    %v260 = vpow.pop %v259
    %v261 = vadd.f32 %v260, 1.0
    %v262 = vrcp.pop %v261
    %v263 = vmul.f32 1.0, %v262
    %v264 = vtanh.pop %v257
    %v265 = vmul.f32 %v263, 0.0
    %267 = vrot.lane.b32.xlu0 %v264, 64
    %v268 = vpop.permute.xlu0 %267
    %v270 = vmul.f32 %v263, %v268
    %272 = vrot.lane.b32.xlu0 %v270, 32
    %v273 = vpop.permute.xlu0 %272
    %v275 = vadd.f32 %v265, %v273
    %v276 = vtanh.pop %v275
    %278 = vrot.lane.b32.xlu0 %v276, 64
    %v279 = vpop.permute.xlu0 %278
    %v281 = vmul.f32 %v263, %v279
    %283 = vrot.lane.b32.xlu0 %v281, 32
    %v284 = vpop.permute.xlu0 %283
    %286 = vst.msk [vmem:[%s4] sm:$0xff] %vm41, %v284
    %s287 = scalar_lea.vmem [#allocation2], 8
    %v288 = vld [vmem:[%s287] sm:$0xff]
    %v289 = vsel %vm41, %v284, 0
    %291 = vmatprep.subr.mxu0 0.0
    %292 = vmatpush1.msra.mxu0 0.0
    %293 = vmatprep.subr.mxu0 0.0
    %294 = vmatpush1.msra.mxu0 0.0
    %295 = vmatprep.subr.mxu0 0.0
    %296 = vmatpush1.msra.mxu0 0.0
    %297 = vmatprep.subr.mxu0 0.0
    %298 = vmatpush1.msra.mxu0 0.0
    %299 = vmatprep.subr.mxu0 0.0
    %300 = vmatpush1.msra.mxu0 0.0
    %301 = vmatprep.subr.mxu0 0.0
    %302 = vmatpush1.msra.mxu0 0.0
    %303 = vmatprep.subr.mxu0 0.0
    %304 = vmatpush1.msra.mxu0 0.0
    %305 = vmatprep.subr.mxu0 0.0
    %306 = vmatpush1.msra.mxu0 0.0
    %307 = vmatprep.subr.mxu0 0.0
    %308 = vmatpush1.msra.mxu0 0.0
    %309 = vmatprep.subr.mxu0 0.0
    %310 = vmatpush1.msra.mxu0 0.0
    %311 = vmatprep.subr.mxu0 0.0
    %312 = vmatpush1.msra.mxu0 0.0
    %313 = vmatprep.subr.mxu0 0.0
    %314 = vmatpush1.msra.mxu0 0.0
    %315 = vmatprep.subr.mxu0 0.0
    %316 = vmatpush1.msra.mxu0 %v182
    %317 = vmatprep.subr.mxu0 0.0
    %318 = vmatpush1.msra.mxu0 %v181
    %319 = vmatprep.subr.mxu0 0.0
    %320 = vmatpush1.msra.mxu0 %v180
    %321 = vmatprep.subr.mxu0 0.0
    %322 = vmatpush1.msra.mxu0 %v179
    %323 = vmatprep.subr.mxu0 0.0
    %324 = vmatpush2.msra.mxu0 0.0
    %325 = vmatprep.subr.mxu0 0.0
    %326 = vmatpush2.msra.mxu0 0.0
    %327 = vmatprep.subr.mxu0 0.0
    %328 = vmatpush2.msra.mxu0 0.0
    %329 = vmatprep.subr.mxu0 0.0
    %330 = vmatpush2.msra.mxu0 0.0
    %331 = vmatprep.subr.mxu0 0.0
    %332 = vmatpush2.msra.mxu0 0.0
    %333 = vmatprep.subr.mxu0 0.0
    %334 = vmatpush2.msra.mxu0 0.0
    %335 = vmatprep.subr.mxu0 0.0
    %336 = vmatpush2.msra.mxu0 0.0
    %337 = vmatprep.subr.mxu0 0.0
    %338 = vmatpush2.msra.mxu0 0.0
    %339 = vmatprep.subr.mxu0 0.0
    %340 = vmatpush2.msra.mxu0 0.0
    %341 = vmatprep.subr.mxu0 0.0
    %342 = vmatpush2.msra.mxu0 0.0
    %343 = vmatprep.subr.mxu0 0.0
    %344 = vmatpush2.msra.mxu0 0.0
    %345 = vmatprep.subr.mxu0 0.0
    %346 = vmatpush2.msra.mxu0 0.0
    %347 = vmatprep.subr.mxu0 0.0
    %348 = vmatpush2.msra.mxu0 0.0
    %349 = vmatprep.subr.mxu0 0.0
    %350 = vmatpush2.msra.mxu0 0.0
    %351 = vmatprep.subr.mxu0 0.0
    %352 = vmatpush2.msra.mxu0 0.0
    %353 = vmatprep.subr.mxu0 0.0
    %354 = vmatpush2.msra.mxu0 0.0
    %355 = vmatprep.mubr.f32.mxu0 0.0
    %356 = vmatmul.mubr.f32.gmra.mxu0 %v289
    %v357 = vpop.f32.mrf.mxu0
    %v358 = vadd.f32 0.0, %v357
    %v359 = vpop.f32.mrf.mxu0
    %360 = vdwg.mxu0
    %v361 = vadd.f32 %v288, %v358
    %v362 = vxor.u32 %v361, 2147483648
    %v363 = vmul.f32 %v362, 1.442695
    %v364 = vpow.pop %v363
    %v365 = vadd.f32 %v364, 1.0
    %v366 = vrcp.pop %v365
    %v367 = vmul.f32 1.0, %v366
    %v368 = vtanh.pop %v361
    %v369 = vmul.f32 %v367, %v275
    %371 = vrot.lane.b32.xlu0 %v368, 64
    %v372 = vpop.permute.xlu0 %371
    %v374 = vmul.f32 %v367, %v372
    %376 = vrot.lane.b32.xlu0 %v374, 32
    %v377 = vpop.permute.xlu0 %376
    %v379 = vadd.f32 %v369, %v377
    %v380 = vtanh.pop %v379
    %382 = vrot.lane.b32.xlu0 %v380, 64
    %v383 = vpop.permute.xlu0 %382
    %v385 = vmul.f32 %v367, %v383
    %387 = vrot.lane.b32.xlu0 %v385, 32
    %v388 = vpop.permute.xlu0 %387
    %s390 = scalar_lea.vmem %s4, 8
    %391 = vst.msk [vmem:[%s390] sm:$0xff] %vm41, %v388
    %s392 = scalar_lea.vmem [#allocation2], 16
    %v393 = vld [vmem:[%s392] sm:$0xff]
    %v394 = vsel %vm41, %v388, 0
    %396 = vmatprep.subr.mxu0 0.0
    %397 = vmatpush1.msra.mxu0 0.0
    %398 = vmatprep.subr.mxu0 0.0
    %399 = vmatpush1.msra.mxu0 0.0
    %400 = vmatprep.subr.mxu0 0.0
    %401 = vmatpush1.msra.mxu0 0.0
    %402 = vmatprep.subr.mxu0 0.0
    %403 = vmatpush1.msra.mxu0 0.0
    %404 = vmatprep.subr.mxu0 0.0
    %405 = vmatpush1.msra.mxu0 0.0
    %406 = vmatprep.subr.mxu0 0.0
    %407 = vmatpush1.msra.mxu0 0.0
    %408 = vmatprep.subr.mxu0 0.0
    %409 = vmatpush1.msra.mxu0 0.0
    %410 = vmatprep.subr.mxu0 0.0
    %411 = vmatpush1.msra.mxu0 0.0
    %412 = vmatprep.subr.mxu0 0.0
    %413 = vmatpush1.msra.mxu0 0.0
    %414 = vmatprep.subr.mxu0 0.0
    %415 = vmatpush1.msra.mxu0 0.0
    %416 = vmatprep.subr.mxu0 0.0
    %417 = vmatpush1.msra.mxu0 0.0
    %418 = vmatprep.subr.mxu0 0.0
    %419 = vmatpush1.msra.mxu0 0.0
    %420 = vmatprep.subr.mxu0 0.0
    %421 = vmatpush1.msra.mxu0 %v182
    %422 = vmatprep.subr.mxu0 0.0
    %423 = vmatpush1.msra.mxu0 %v181
    %424 = vmatprep.subr.mxu0 0.0
    %425 = vmatpush1.msra.mxu0 %v180
    %426 = vmatprep.subr.mxu0 0.0
    %427 = vmatpush1.msra.mxu0 %v179
    %428 = vmatprep.subr.mxu0 0.0
    %429 = vmatpush2.msra.mxu0 0.0
    %430 = vmatprep.subr.mxu0 0.0
    %431 = vmatpush2.msra.mxu0 0.0
    %432 = vmatprep.subr.mxu0 0.0
    %433 = vmatpush2.msra.mxu0 0.0
    %434 = vmatprep.subr.mxu0 0.0
    %435 = vmatpush2.msra.mxu0 0.0
    %436 = vmatprep.subr.mxu0 0.0
    %437 = vmatpush2.msra.mxu0 0.0
    %438 = vmatprep.subr.mxu0 0.0
    %439 = vmatpush2.msra.mxu0 0.0
    %440 = vmatprep.subr.mxu0 0.0
    %441 = vmatpush2.msra.mxu0 0.0
    %442 = vmatprep.subr.mxu0 0.0
    %443 = vmatpush2.msra.mxu0 0.0
    %444 = vmatprep.subr.mxu0 0.0
    %445 = vmatpush2.msra.mxu0 0.0
    %446 = vmatprep.subr.mxu0 0.0
    %447 = vmatpush2.msra.mxu0 0.0
    %448 = vmatprep.subr.mxu0 0.0
    %449 = vmatpush2.msra.mxu0 0.0
    %450 = vmatprep.subr.mxu0 0.0
    %451 = vmatpush2.msra.mxu0 0.0
    %452 = vmatprep.subr.mxu0 0.0
    %453 = vmatpush2.msra.mxu0 0.0
    %454 = vmatprep.subr.mxu0 0.0
    %455 = vmatpush2.msra.mxu0 0.0
    %456 = vmatprep.subr.mxu0 0.0
    %457 = vmatpush2.msra.mxu0 0.0
    %458 = vmatprep.subr.mxu0 0.0
    %459 = vmatpush2.msra.mxu0 0.0
    %460 = vmatprep.mubr.f32.mxu0 0.0
    %461 = vmatmul.mubr.f32.gmra.mxu0 %v394
    %v462 = vpop.f32.mrf.mxu0
    %v463 = vadd.f32 0.0, %v462
    %v464 = vpop.f32.mrf.mxu0
    %465 = vdwg.mxu0
    %v466 = vadd.f32 %v393, %v463
    %v467 = vxor.u32 %v466, 2147483648
    %v468 = vmul.f32 %v467, 1.442695
    %v469 = vpow.pop %v468
    %v470 = vadd.f32 %v469, 1.0
    %v471 = vrcp.pop %v470
    %v472 = vmul.f32 1.0, %v471
    %v473 = vtanh.pop %v466
    %v474 = vmul.f32 %v472, %v379
    %476 = vrot.lane.b32.xlu0 %v473, 64
    %v477 = vpop.permute.xlu0 %476
    %v479 = vmul.f32 %v472, %v477
    %481 = vrot.lane.b32.xlu0 %v479, 32
    %v482 = vpop.permute.xlu0 %481
    %v484 = vadd.f32 %v474, %v482
    %v485 = vtanh.pop %v484
    %487 = vrot.lane.b32.xlu0 %v485, 64
    %v488 = vpop.permute.xlu0 %487
    %v490 = vmul.f32 %v472, %v488
    %492 = vrot.lane.b32.xlu0 %v490, 32
    %v493 = vpop.permute.xlu0 %492
    %s495 = scalar_lea.vmem %s4, 16
    %496 = vst.msk [vmem:[%s495] sm:$0xff] %vm41, %v493
    %s497 = scalar_lea.vmem [#allocation2], 24
    %v498 = vld [vmem:[%s497] sm:$0xff]
    %v499 = vsel %vm41, %v493, 0
    %501 = vmatprep.subr.mxu0 0.0
    %502 = vmatpush1.msra.mxu0 0.0
    %503 = vmatprep.subr.mxu0 0.0
    %504 = vmatpush1.msra.mxu0 0.0
    %505 = vmatprep.subr.mxu0 0.0
    %506 = vmatpush1.msra.mxu0 0.0
    %507 = vmatprep.subr.mxu0 0.0
    %508 = vmatpush1.msra.mxu0 0.0
    %509 = vmatprep.subr.mxu0 0.0
    %510 = vmatpush1.msra.mxu0 0.0
    %511 = vmatprep.subr.mxu0 0.0
    %512 = vmatpush1.msra.mxu0 0.0
    %513 = vmatprep.subr.mxu0 0.0
    %514 = vmatpush1.msra.mxu0 0.0
    %515 = vmatprep.subr.mxu0 0.0
    %516 = vmatpush1.msra.mxu0 0.0
    %517 = vmatprep.subr.mxu0 0.0
    %518 = vmatpush1.msra.mxu0 0.0
    %519 = vmatprep.subr.mxu0 0.0
    %520 = vmatpush1.msra.mxu0 0.0
    %521 = vmatprep.subr.mxu0 0.0
    %522 = vmatpush1.msra.mxu0 0.0
    %523 = vmatprep.subr.mxu0 0.0
    %524 = vmatpush1.msra.mxu0 0.0
    %525 = vmatprep.subr.mxu0 0.0
    %526 = vmatpush1.msra.mxu0 %v182
    %527 = vmatprep.subr.mxu0 0.0
    %528 = vmatpush1.msra.mxu0 %v181
    %529 = vmatprep.subr.mxu0 0.0
    %530 = vmatpush1.msra.mxu0 %v180
    %531 = vmatprep.subr.mxu0 0.0
    %532 = vmatpush1.msra.mxu0 %v179
    %533 = vmatprep.subr.mxu0 0.0
    %534 = vmatpush2.msra.mxu0 0.0
    %535 = vmatprep.subr.mxu0 0.0
    %536 = vmatpush2.msra.mxu0 0.0
    %537 = vmatprep.subr.mxu0 0.0
    %538 = vmatpush2.msra.mxu0 0.0
    %539 = vmatprep.subr.mxu0 0.0
    %540 = vmatpush2.msra.mxu0 0.0
    %541 = vmatprep.subr.mxu0 0.0
    %542 = vmatpush2.msra.mxu0 0.0
    %543 = vmatprep.subr.mxu0 0.0
    %544 = vmatpush2.msra.mxu0 0.0
    %545 = vmatprep.subr.mxu0 0.0
    %546 = vmatpush2.msra.mxu0 0.0
    %547 = vmatprep.subr.mxu0 0.0
    %548 = vmatpush2.msra.mxu0 0.0
    %549 = vmatprep.subr.mxu0 0.0
    %550 = vmatpush2.msra.mxu0 0.0
    %551 = vmatprep.subr.mxu0 0.0
    %552 = vmatpush2.msra.mxu0 0.0
    %553 = vmatprep.subr.mxu0 0.0
    %554 = vmatpush2.msra.mxu0 0.0
    %555 = vmatprep.subr.mxu0 0.0
    %556 = vmatpush2.msra.mxu0 0.0
    %557 = vmatprep.subr.mxu0 0.0
    %558 = vmatpush2.msra.mxu0 0.0
    %559 = vmatprep.subr.mxu0 0.0
    %560 = vmatpush2.msra.mxu0 0.0
    %561 = vmatprep.subr.mxu0 0.0
    %562 = vmatpush2.msra.mxu0 0.0
    %563 = vmatprep.subr.mxu0 0.0
    %564 = vmatpush2.msra.mxu0 0.0
    %565 = vmatprep.mubr.f32.mxu0 0.0
    %566 = vmatmul.mubr.f32.gmra.mxu0 %v499
    %v567 = vpop.f32.mrf.mxu0
    %v568 = vadd.f32 0.0, %v567
    %v569 = vpop.f32.mrf.mxu0
    %570 = vdwg.mxu0
    %v571 = vadd.f32 %v498, %v568
    %v572 = vxor.u32 %v571, 2147483648
    %v573 = vmul.f32 %v572, 1.442695
    %v574 = vpow.pop %v573
    %v575 = vadd.f32 %v574, 1.0
    %v576 = vrcp.pop %v575
    %v577 = vmul.f32 1.0, %v576
    %v578 = vtanh.pop %v571
    %v579 = vmul.f32 %v577, %v484
    %581 = vrot.lane.b32.xlu0 %v578, 64
    %v582 = vpop.permute.xlu0 %581
    %v584 = vmul.f32 %v577, %v582
    %586 = vrot.lane.b32.xlu0 %v584, 32
    %v587 = vpop.permute.xlu0 %586
    %v589 = vadd.f32 %v579, %v587
    %v590 = vtanh.pop %v589
    %592 = vrot.lane.b32.xlu0 %v590, 64
    %v593 = vpop.permute.xlu0 %592
    %v595 = vmul.f32 %v577, %v593
    %597 = vrot.lane.b32.xlu0 %v595, 32
    %v598 = vpop.permute.xlu0 %597
    %s600 = scalar_lea.vmem %s4, 24
    %601 = vst.msk [vmem:[%s600] sm:$0xff] %vm41, %v598
    %s602 = scalar_lea.vmem [#allocation2], 32
    %v603 = vld [vmem:[%s602] sm:$0xff]
    %v604 = vsel %vm41, %v598, 0
    %606 = vmatprep.subr.mxu0 0.0
    %607 = vmatpush1.msra.mxu0 0.0
    %608 = vmatprep.subr.mxu0 0.0
    %609 = vmatpush1.msra.mxu0 0.0
    %610 = vmatprep.subr.mxu0 0.0
    %611 = vmatpush1.msra.mxu0 0.0
    %612 = vmatprep.subr.mxu0 0.0
    %613 = vmatpush1.msra.mxu0 0.0
    %614 = vmatprep.subr.mxu0 0.0
    %615 = vmatpush1.msra.mxu0 0.0
    %616 = vmatprep.subr.mxu0 0.0
    %617 = vmatpush1.msra.mxu0 0.0
    %618 = vmatprep.subr.mxu0 0.0
    %619 = vmatpush1.msra.mxu0 0.0
    %620 = vmatprep.subr.mxu0 0.0
    %621 = vmatpush1.msra.mxu0 0.0
    %622 = vmatprep.subr.mxu0 0.0
    %623 = vmatpush1.msra.mxu0 0.0
    %624 = vmatprep.subr.mxu0 0.0
    %625 = vmatpush1.msra.mxu0 0.0
    %626 = vmatprep.subr.mxu0 0.0
    %627 = vmatpush1.msra.mxu0 0.0
    %628 = vmatprep.subr.mxu0 0.0
    %629 = vmatpush1.msra.mxu0 0.0
    %630 = vmatprep.subr.mxu0 0.0
    %631 = vmatpush1.msra.mxu0 %v182
    %632 = vmatprep.subr.mxu0 0.0
    %633 = vmatpush1.msra.mxu0 %v181
    %634 = vmatprep.subr.mxu0 0.0
    %635 = vmatpush1.msra.mxu0 %v180
    %636 = vmatprep.subr.mxu0 0.0
    %637 = vmatpush1.msra.mxu0 %v179
    %638 = vmatprep.subr.mxu0 0.0
    %639 = vmatpush2.msra.mxu0 0.0
    %640 = vmatprep.subr.mxu0 0.0
    %641 = vmatpush2.msra.mxu0 0.0
    %642 = vmatprep.subr.mxu0 0.0
    %643 = vmatpush2.msra.mxu0 0.0
    %644 = vmatprep.subr.mxu0 0.0
    %645 = vmatpush2.msra.mxu0 0.0
    %646 = vmatprep.subr.mxu0 0.0
    %647 = vmatpush2.msra.mxu0 0.0
    %648 = vmatprep.subr.mxu0 0.0
    %649 = vmatpush2.msra.mxu0 0.0
    %650 = vmatprep.subr.mxu0 0.0
    %651 = vmatpush2.msra.mxu0 0.0
    %652 = vmatprep.subr.mxu0 0.0
    %653 = vmatpush2.msra.mxu0 0.0
    %654 = vmatprep.subr.mxu0 0.0
    %655 = vmatpush2.msra.mxu0 0.0
    %656 = vmatprep.subr.mxu0 0.0
    %657 = vmatpush2.msra.mxu0 0.0
    %658 = vmatprep.subr.mxu0 0.0
    %659 = vmatpush2.msra.mxu0 0.0
    %660 = vmatprep.subr.mxu0 0.0
    %661 = vmatpush2.msra.mxu0 0.0
    %662 = vmatprep.subr.mxu0 0.0
    %663 = vmatpush2.msra.mxu0 0.0
    %664 = vmatprep.subr.mxu0 0.0
    %665 = vmatpush2.msra.mxu0 0.0
    %666 = vmatprep.subr.mxu0 0.0
    %667 = vmatpush2.msra.mxu0 0.0
    %668 = vmatprep.subr.mxu0 0.0
    %669 = vmatpush2.msra.mxu0 0.0
    %670 = vmatprep.mubr.f32.mxu0 0.0
    %671 = vmatmul.mubr.f32.gmra.mxu0 %v604
    %v672 = vpop.f32.mrf.mxu0
    %v673 = vadd.f32 0.0, %v672
    %v674 = vpop.f32.mrf.mxu0
    %675 = vdwg.mxu0
    %v676 = vadd.f32 %v603, %v673
    %v677 = vxor.u32 %v676, 2147483648
    %v678 = vmul.f32 %v677, 1.442695
    %v679 = vpow.pop %v678
    %v680 = vadd.f32 %v679, 1.0
    %v681 = vrcp.pop %v680
    %v682 = vmul.f32 1.0, %v681
    %v683 = vtanh.pop %v676
    %v684 = vmul.f32 %v682, %v589
    %686 = vrot.lane.b32.xlu0 %v683, 64
    %v687 = vpop.permute.xlu0 %686
    %v689 = vmul.f32 %v682, %v687
    %691 = vrot.lane.b32.xlu0 %v689, 32
    %v692 = vpop.permute.xlu0 %691
    %v694 = vadd.f32 %v684, %v692
    %v695 = vtanh.pop %v694
    %697 = vrot.lane.b32.xlu0 %v695, 64
    %v698 = vpop.permute.xlu0 %697
    %v700 = vmul.f32 %v682, %v698
    %702 = vrot.lane.b32.xlu0 %v700, 32
    %v703 = vpop.permute.xlu0 %702
    %s705 = scalar_lea.vmem %s4, 32
    %706 = vst.msk [vmem:[%s705] sm:$0xff] %vm41, %v703
    %s707 = scalar_lea.vmem [#allocation2], 40
    %v708 = vld [vmem:[%s707] sm:$0xff]
    %v709 = vsel %vm41, %v703, 0
    %711 = vmatprep.subr.mxu0 0.0
    %712 = vmatpush1.msra.mxu0 0.0
    %713 = vmatprep.subr.mxu0 0.0
    %714 = vmatpush1.msra.mxu0 0.0
    %715 = vmatprep.subr.mxu0 0.0
    %716 = vmatpush1.msra.mxu0 0.0
    %717 = vmatprep.subr.mxu0 0.0
    %718 = vmatpush1.msra.mxu0 0.0
    %719 = vmatprep.subr.mxu0 0.0
    %720 = vmatpush1.msra.mxu0 0.0
    %721 = vmatprep.subr.mxu0 0.0
    %722 = vmatpush1.msra.mxu0 0.0
    %723 = vmatprep.subr.mxu0 0.0
    %724 = vmatpush1.msra.mxu0 0.0
    %725 = vmatprep.subr.mxu0 0.0
    %726 = vmatpush1.msra.mxu0 0.0
    %727 = vmatprep.subr.mxu0 0.0
    %728 = vmatpush1.msra.mxu0 0.0
    %729 = vmatprep.subr.mxu0 0.0
    %730 = vmatpush1.msra.mxu0 0.0
    %731 = vmatprep.subr.mxu0 0.0
    %732 = vmatpush1.msra.mxu0 0.0
    %733 = vmatprep.subr.mxu0 0.0
    %734 = vmatpush1.msra.mxu0 0.0
    %735 = vmatprep.subr.mxu0 0.0
    %736 = vmatpush1.msra.mxu0 %v182
    %737 = vmatprep.subr.mxu0 0.0
    %738 = vmatpush1.msra.mxu0 %v181
    %739 = vmatprep.subr.mxu0 0.0
    %740 = vmatpush1.msra.mxu0 %v180
    %741 = vmatprep.subr.mxu0 0.0
    %742 = vmatpush1.msra.mxu0 %v179
    %743 = vmatprep.subr.mxu0 0.0
    %744 = vmatpush2.msra.mxu0 0.0
    %745 = vmatprep.subr.mxu0 0.0
    %746 = vmatpush2.msra.mxu0 0.0
    %747 = vmatprep.subr.mxu0 0.0
    %748 = vmatpush2.msra.mxu0 0.0
    %749 = vmatprep.subr.mxu0 0.0
    %750 = vmatpush2.msra.mxu0 0.0
    %751 = vmatprep.subr.mxu0 0.0
    %752 = vmatpush2.msra.mxu0 0.0
    %753 = vmatprep.subr.mxu0 0.0
    %754 = vmatpush2.msra.mxu0 0.0
    %755 = vmatprep.subr.mxu0 0.0
    %756 = vmatpush2.msra.mxu0 0.0
    %757 = vmatprep.subr.mxu0 0.0
    %758 = vmatpush2.msra.mxu0 0.0
    %759 = vmatprep.subr.mxu0 0.0
    %760 = vmatpush2.msra.mxu0 0.0
    %761 = vmatprep.subr.mxu0 0.0
    %762 = vmatpush2.msra.mxu0 0.0
    %763 = vmatprep.subr.mxu0 0.0
    %764 = vmatpush2.msra.mxu0 0.0
    %765 = vmatprep.subr.mxu0 0.0
    %766 = vmatpush2.msra.mxu0 0.0
    %767 = vmatprep.subr.mxu0 0.0
    %768 = vmatpush2.msra.mxu0 0.0
    %769 = vmatprep.subr.mxu0 0.0
    %770 = vmatpush2.msra.mxu0 0.0
    %771 = vmatprep.subr.mxu0 0.0
    %772 = vmatpush2.msra.mxu0 0.0
    %773 = vmatprep.subr.mxu0 0.0
    %774 = vmatpush2.msra.mxu0 0.0
    %775 = vmatprep.mubr.f32.mxu0 0.0
    %776 = vmatmul.mubr.f32.gmra.mxu0 %v709
    %v777 = vpop.f32.mrf.mxu0
    %v778 = vadd.f32 0.0, %v777
    %v779 = vpop.f32.mrf.mxu0
    %780 = vdwg.mxu0
    %v781 = vadd.f32 %v708, %v778
    %v782 = vxor.u32 %v781, 2147483648
    %v783 = vmul.f32 %v782, 1.442695
    %v784 = vpow.pop %v783
    %v785 = vadd.f32 %v784, 1.0
    %v786 = vrcp.pop %v785
    %v787 = vmul.f32 1.0, %v786
    %v788 = vtanh.pop %v781
    %v789 = vmul.f32 %v787, %v694
    %791 = vrot.lane.b32.xlu0 %v788, 64
    %v792 = vpop.permute.xlu0 %791
    %v794 = vmul.f32 %v787, %v792
    %796 = vrot.lane.b32.xlu0 %v794, 32
    %v797 = vpop.permute.xlu0 %796
    %v799 = vadd.f32 %v789, %v797
    %v800 = vtanh.pop %v799
    %802 = vrot.lane.b32.xlu0 %v800, 64
    %v803 = vpop.permute.xlu0 %802
    %v805 = vmul.f32 %v787, %v803
    %807 = vrot.lane.b32.xlu0 %v805, 32
    %v808 = vpop.permute.xlu0 %807
    %s810 = scalar_lea.vmem %s4, 40
    %811 = vst.msk [vmem:[%s810] sm:$0xff] %vm41, %v808
    %s812 = scalar_lea.vmem [#allocation2], 48
    %v813 = vld [vmem:[%s812] sm:$0xff]
    %v814 = vsel %vm41, %v808, 0
    %816 = vmatprep.subr.mxu0 0.0
    %817 = vmatpush1.msra.mxu0 0.0
    %818 = vmatprep.subr.mxu0 0.0
    %819 = vmatpush1.msra.mxu0 0.0
    %820 = vmatprep.subr.mxu0 0.0
    %821 = vmatpush1.msra.mxu0 0.0
    %822 = vmatprep.subr.mxu0 0.0
    %823 = vmatpush1.msra.mxu0 0.0
    %824 = vmatprep.subr.mxu0 0.0
    %825 = vmatpush1.msra.mxu0 0.0
    %826 = vmatprep.subr.mxu0 0.0
    %827 = vmatpush1.msra.mxu0 0.0
    %828 = vmatprep.subr.mxu0 0.0
    %829 = vmatpush1.msra.mxu0 0.0
    %830 = vmatprep.subr.mxu0 0.0
    %831 = vmatpush1.msra.mxu0 0.0
    %832 = vmatprep.subr.mxu0 0.0
    %833 = vmatpush1.msra.mxu0 0.0
    %834 = vmatprep.subr.mxu0 0.0
    %835 = vmatpush1.msra.mxu0 0.0
    %836 = vmatprep.subr.mxu0 0.0
    %837 = vmatpush1.msra.mxu0 0.0
    %838 = vmatprep.subr.mxu0 0.0
    %839 = vmatpush1.msra.mxu0 0.0
    %840 = vmatprep.subr.mxu0 0.0
    %841 = vmatpush1.msra.mxu0 %v182
    %842 = vmatprep.subr.mxu0 0.0
    %843 = vmatpush1.msra.mxu0 %v181
    %844 = vmatprep.subr.mxu0 0.0
    %845 = vmatpush1.msra.mxu0 %v180
    %846 = vmatprep.subr.mxu0 0.0
    %847 = vmatpush1.msra.mxu0 %v179
    %848 = vmatprep.subr.mxu0 0.0
    %849 = vmatpush2.msra.mxu0 0.0
    %850 = vmatprep.subr.mxu0 0.0
    %851 = vmatpush2.msra.mxu0 0.0
    %852 = vmatprep.subr.mxu0 0.0
    %853 = vmatpush2.msra.mxu0 0.0
    %854 = vmatprep.subr.mxu0 0.0
    %855 = vmatpush2.msra.mxu0 0.0
    %856 = vmatprep.subr.mxu0 0.0
    %857 = vmatpush2.msra.mxu0 0.0
    %858 = vmatprep.subr.mxu0 0.0
    %859 = vmatpush2.msra.mxu0 0.0
    %860 = vmatprep.subr.mxu0 0.0
    %861 = vmatpush2.msra.mxu0 0.0
    %862 = vmatprep.subr.mxu0 0.0
    %863 = vmatpush2.msra.mxu0 0.0
    %864 = vmatprep.subr.mxu0 0.0
    %865 = vmatpush2.msra.mxu0 0.0
    %866 = vmatprep.subr.mxu0 0.0
    %867 = vmatpush2.msra.mxu0 0.0
    %868 = vmatprep.subr.mxu0 0.0
    %869 = vmatpush2.msra.mxu0 0.0
    %870 = vmatprep.subr.mxu0 0.0
    %871 = vmatpush2.msra.mxu0 0.0
    %872 = vmatprep.subr.mxu0 0.0
    %873 = vmatpush2.msra.mxu0 0.0
    %874 = vmatprep.subr.mxu0 0.0
    %875 = vmatpush2.msra.mxu0 0.0
    %876 = vmatprep.subr.mxu0 0.0
    %877 = vmatpush2.msra.mxu0 0.0
    %878 = vmatprep.subr.mxu0 0.0
    %879 = vmatpush2.msra.mxu0 0.0
    %880 = vmatprep.mubr.f32.mxu0 0.0
    %881 = vmatmul.mubr.f32.gmra.mxu0 %v814
    %v882 = vpop.f32.mrf.mxu0
    %v883 = vadd.f32 0.0, %v882
    %v884 = vpop.f32.mrf.mxu0
    %885 = vdwg.mxu0
    %v886 = vadd.f32 %v813, %v883
    %v887 = vxor.u32 %v886, 2147483648
    %v888 = vmul.f32 %v887, 1.442695
    %v889 = vpow.pop %v888
    %v890 = vadd.f32 %v889, 1.0
    %v891 = vrcp.pop %v890
    %v892 = vmul.f32 1.0, %v891
    %v893 = vtanh.pop %v886
    %v894 = vmul.f32 %v892, %v799
    %896 = vrot.lane.b32.xlu0 %v893, 64
    %v897 = vpop.permute.xlu0 %896
    %v899 = vmul.f32 %v892, %v897
    %901 = vrot.lane.b32.xlu0 %v899, 32
    %v902 = vpop.permute.xlu0 %901
    %v904 = vadd.f32 %v894, %v902
    %v905 = vtanh.pop %v904
    %907 = vrot.lane.b32.xlu0 %v905, 64
    %v908 = vpop.permute.xlu0 %907
    %v910 = vmul.f32 %v892, %v908
    %912 = vrot.lane.b32.xlu0 %v910, 32
    %v913 = vpop.permute.xlu0 %912
    %s915 = scalar_lea.vmem %s4, 48
    %916 = vst.msk [vmem:[%s915] sm:$0xff] %vm41, %v913
    %s917 = scalar_lea.vmem [#allocation2], 56
    %v918 = vld [vmem:[%s917] sm:$0xff]
    %v919 = vsel %vm41, %v913, 0
    %921 = vmatprep.subr.mxu0 0.0
    %922 = vmatpush1.msra.mxu0 0.0
    %923 = vmatprep.subr.mxu0 0.0
    %924 = vmatpush1.msra.mxu0 0.0
    %925 = vmatprep.subr.mxu0 0.0
    %926 = vmatpush1.msra.mxu0 0.0
    %927 = vmatprep.subr.mxu0 0.0
    %928 = vmatpush1.msra.mxu0 0.0
    %929 = vmatprep.subr.mxu0 0.0
    %930 = vmatpush1.msra.mxu0 0.0
    %931 = vmatprep.subr.mxu0 0.0
    %932 = vmatpush1.msra.mxu0 0.0
    %933 = vmatprep.subr.mxu0 0.0
    %934 = vmatpush1.msra.mxu0 0.0
    %935 = vmatprep.subr.mxu0 0.0
    %936 = vmatpush1.msra.mxu0 0.0
    %937 = vmatprep.subr.mxu0 0.0
    %938 = vmatpush1.msra.mxu0 0.0
    %939 = vmatprep.subr.mxu0 0.0
    %940 = vmatpush1.msra.mxu0 0.0
    %941 = vmatprep.subr.mxu0 0.0
    %942 = vmatpush1.msra.mxu0 0.0
    %943 = vmatprep.subr.mxu0 0.0
    %944 = vmatpush1.msra.mxu0 0.0
    %945 = vmatprep.subr.mxu0 0.0
    %946 = vmatpush1.msra.mxu0 %v182
    %947 = vmatprep.subr.mxu0 0.0
    %948 = vmatpush1.msra.mxu0 %v181
    %949 = vmatprep.subr.mxu0 0.0
    %950 = vmatpush1.msra.mxu0 %v180
    %951 = vmatprep.subr.mxu0 0.0
    %952 = vmatpush1.msra.mxu0 %v179
    %953 = vmatprep.subr.mxu0 0.0
    %954 = vmatpush2.msra.mxu0 0.0
    %955 = vmatprep.subr.mxu0 0.0
    %956 = vmatpush2.msra.mxu0 0.0
    %957 = vmatprep.subr.mxu0 0.0
    %958 = vmatpush2.msra.mxu0 0.0
    %959 = vmatprep.subr.mxu0 0.0
    %960 = vmatpush2.msra.mxu0 0.0
    %961 = vmatprep.subr.mxu0 0.0
    %962 = vmatpush2.msra.mxu0 0.0
    %963 = vmatprep.subr.mxu0 0.0
    %964 = vmatpush2.msra.mxu0 0.0
    %965 = vmatprep.subr.mxu0 0.0
    %966 = vmatpush2.msra.mxu0 0.0
    %967 = vmatprep.subr.mxu0 0.0
    %968 = vmatpush2.msra.mxu0 0.0
    %969 = vmatprep.subr.mxu0 0.0
    %970 = vmatpush2.msra.mxu0 0.0
    %971 = vmatprep.subr.mxu0 0.0
    %972 = vmatpush2.msra.mxu0 0.0
    %973 = vmatprep.subr.mxu0 0.0
    %974 = vmatpush2.msra.mxu0 0.0
    %975 = vmatprep.subr.mxu0 0.0
    %976 = vmatpush2.msra.mxu0 0.0
    %977 = vmatprep.subr.mxu0 0.0
    %978 = vmatpush2.msra.mxu0 0.0
    %979 = vmatprep.subr.mxu0 0.0
    %980 = vmatpush2.msra.mxu0 0.0
    %981 = vmatprep.subr.mxu0 0.0
    %982 = vmatpush2.msra.mxu0 0.0
    %983 = vmatprep.subr.mxu0 0.0
    %984 = vmatpush2.msra.mxu0 0.0
    %985 = vmatprep.mubr.f32.mxu0 0.0
    %986 = vmatmul.mubr.f32.gmra.mxu0 %v919
    %v987 = vpop.f32.mrf.mxu0
    %v988 = vadd.f32 0.0, %v987
    %v989 = vpop.f32.mrf.mxu0
    %990 = vdwg.mxu0
    %v991 = vadd.f32 %v918, %v988
    %v992 = vxor.u32 %v991, 2147483648
    %v993 = vmul.f32 %v992, 1.442695
    %v994 = vpow.pop %v993
    %v995 = vadd.f32 %v994, 1.0
    %v996 = vrcp.pop %v995
    %v997 = vmul.f32 1.0, %v996
    %v998 = vtanh.pop %v991
    %v999 = vmul.f32 %v997, %v904
    %1001 = vrot.lane.b32.xlu0 %v998, 64
    %v1002 = vpop.permute.xlu0 %1001
    %v1004 = vmul.f32 %v997, %v1002
    %1006 = vrot.lane.b32.xlu0 %v1004, 32
    %v1007 = vpop.permute.xlu0 %1006
    %v1009 = vadd.f32 %v999, %v1007
    %v1010 = vtanh.pop %v1009
    %1012 = vrot.lane.b32.xlu0 %v1010, 64
    %v1013 = vpop.permute.xlu0 %1012
    %v1015 = vmul.f32 %v997, %v1013
    %1017 = vrot.lane.b32.xlu0 %v1015, 32
    %v1018 = vpop.permute.xlu0 %1017
    %s1020 = scalar_lea.vmem %s4, 56
    %1021 = vst.msk [vmem:[%s1020] sm:$0xff] %vm41, %v1018
    %1022 = vst.msk [vmem:[#allocation3] sm:$0xff] %vm41, %v1018
    %1024 = vrot.lane.b32.xlu0 %v1009, 96
    %v1025 = vpop.permute.xlu0 %1024
    %1027 = vst.msk [vmem:[#allocation5] sm:$0xff] %vm41, %v1025
    // Predicated region
    $region18: #{net_forward.2} parent=1 // pred_check
      _
    $region19: #{net_forward.2} parent=1 // pred_check_branch
      %1029 = sbr.rel (0) target = $region21
    $region20: #{net_forward.2} parent=1 // pred_region
      _
    $region21: #{net_forward.2} parent=1 // pred_fallthru
      _
    // Predicated region
    $region22: #{net_forward.2} parent=1 // pred_check
      _
    $region23: #{net_forward.2} parent=1 // pred_check_branch
      %1031 = sbr.rel (0) target = $region25
    $region24: #{net_forward.2} parent=1 // pred_region
      %s1033 = ssub.s32 128, 128
      %1034 = vsyncadd [#allocation4], %s1033
      %s1036 = sshll.u32 [#allocation3], 4
      %s1037 = int_to_ptr.vmem [resolvable:$true] %s1036
      %1039 = dma.vmem_to_hbm [thread:$0]  %s1037, 128, %s5, [#allocation4]
    $region25: #{net_forward.2} parent=1 // pred_fallthru
      _
    // Predicated region
    $region26: #{net_forward.2} parent=1 // pred_check
      _
    $region27: #{net_forward.2} parent=1 // pred_check_branch
      %1041 = sbr.rel (0) target = $region29
    $region28: #{net_forward.2} parent=1 // pred_region
      %s1043 = ssub.s32 128, 128
      %1044 = vsyncadd [#allocation6], %s1043
      %s1046 = sshll.u32 [#allocation5], 4
      %s1047 = int_to_ptr.vmem [resolvable:$true] %s1046
      %1049 = dma.vmem_to_hbm [thread:$0]  %s1047, 128, %s6, [#allocation6]
    $region29: #{net_forward.2} parent=1 // pred_fallthru
      _
    // Predicated region
    $region30: #{net_forward.2} parent=1 // pred_check
      _
    $region31: #{net_forward.2} parent=1 // pred_check_branch
      %1051 = sbr.rel (0) target = $region33
    $region32: #{net_forward.2} parent=1 // pred_region
      _
    $region33: #{net_forward.2} parent=1 // pred_fallthru
      _
    // Predicated region
    $region34: #{net_forward.2} parent=1 // pred_check
      _
    $region35: #{net_forward.2} parent=1 // pred_check_branch
      %1053 = sbr.rel (0) target = $region37
    $region36: #{net_forward.2} parent=1 // pred_region
      %1054 = dma.done [#allocation4], 128
    $region37: #{net_forward.2} parent=1 // pred_fallthru
      _
    // Predicated region
    $region38: #{net_forward.2} parent=1 // pred_check
      _
    $region39: #{net_forward.2} parent=1 // pred_check_branch
      %1056 = sbr.rel (0) target = $region41
    $region40: #{net_forward.2} parent=1 // pred_region
      %1057 = dma.done [#allocation6], 128
    $region41: #{net_forward.2} parent=1 // pred_fallthru
      _
    %1058 = vsyncpa [#allocation4], 1
    %1059 = vsyncpa [#allocation6], 1

</llo_original>
